<compile_context>
chip_gen: v7x
topology: tpu7x:2x2x1
jax: 0.10.0
libtpu: 0.0.40
codegen_flags: <defaults>
</compile_context>

<pallas_src>
import functools

import jax
import jax.numpy as jnp
from jax.experimental import pallas as pl
from jax.experimental.pallas import tpu as pltpu

INPUT_DIM = 11
HIDDEN_DIM = 256
OUTPUT_DIM = 4
NUM_HIDDEN_LAYERS = 5   # 1 input linear + (NUM_HIDDEN_LAYERS-1) hidden linears + 1 output linear
OUT_PAD = 128           # lane-dense padded output width (multiple of 128)


def _cdiv(a, b):
    return -(-a // b)


def _round_up(x, m):
    return _cdiv(x, m) * m


def _chip_config():
    """Per-generation tile cap / VMEM limit / minimum grid steps."""
    kind = ""
    try:
        kind = jax.devices()[0].device_kind.lower().replace(" ", "")
    except Exception:
        pass
    if "v5lite" in kind or "v5e" in kind:
        # MXU-bound; 128 MiB VMEM but only a 16 MiB scoped default -> raise it.
        return dict(max_tile=2048, vmem_limit=64 << 20, min_steps=1)
    if "v6" in kind or "trillium" in kind:
        return dict(max_tile=4096, vmem_limit=96 << 20, min_steps=1)
    if "v7" in kind:
        # 2 TensorCores, only 64 MiB physical VMEM per core: want >= 2 parallel steps.
        return dict(max_tile=4096, vmem_limit=48 << 20, min_steps=2)
    if "v4" in kind or "v5p" in kind or "v5" in kind:
        # Megacore chips (2 TCs).
        return dict(max_tile=2048, vmem_limit=64 << 20, min_steps=2)
    # Unknown chip: conservative caps that fit every generation.
    return dict(max_tile=2048, vmem_limit=48 << 20, min_steps=2)


def _mlp_kernel(x_ref, w_in_ref, b_in_ref, w_h_ref, b_h_ref, w_out_ref, b_out_ref,
                o_ref, *, num_mid_layers):
    # Layer 1: (TB, 11) @ (11, 256) bf16 on the MXU, f32 accumulation; bias+ReLU in f32.
    h = jnp.dot(x_ref[...], w_in_ref[...], preferred_element_type=jnp.float32)
    h = jnp.maximum(h + b_in_ref[...], 0.0)

    # Hidden layers (stacked bf16 weights), statically unrolled.  The bf16 cast
    # stays inside the dot operand expression so it can fuse into the MXU feed
    # rather than materializing a (TB, 256) bf16 temp in VMEM each layer.
    for l in range(num_mid_layers):
        h = jnp.dot(h.astype(jnp.bfloat16), w_h_ref[l],
                    preferred_element_type=jnp.float32)
        h = jnp.maximum(h + b_h_ref[l], 0.0)

    # Output layer (lane-padded to OUT_PAD), no activation; bias-add in f32,
    # lane-dense store in the (bf16) output dtype.
    out = jnp.dot(h.astype(jnp.bfloat16), w_out_ref[...],
                  preferred_element_type=jnp.float32)
    o_ref[...] = (out + b_out_ref[...]).astype(o_ref.dtype)


def prepare_params(params):
    """One-time parameter prep (hoisted out of the per-call path):
    bf16 matmul weights, f32 biases, output layer zero-padded to OUT_PAD lanes."""
    w_in, b_in, w_h, b_h, w_out, b_out = params
    w_in_bf = w_in.astype(jnp.bfloat16)
    w_h_bf = w_h.astype(jnp.bfloat16)
    w_out_p = jnp.zeros((HIDDEN_DIM, OUT_PAD), jnp.bfloat16)
    w_out_p = w_out_p.at[:, :OUTPUT_DIM].set(w_out.astype(jnp.bfloat16))
    b_out_p = jnp.zeros((1, OUT_PAD), jnp.float32)
    b_out_p = b_out_p.at[:, :OUTPUT_DIM].set(b_out.astype(jnp.float32))
    return (w_in_bf, b_in.astype(jnp.float32), w_h_bf, b_h.astype(jnp.float32),
            w_out_p, b_out_p)


def _choose_tile_b(B, *, max_tile, min_steps):
    """Large 128-multiple batch tiles (amortize per-step overhead and weight
    pushes); guarantee >= min_steps grid steps so 2-TC chips use both cores."""
    if min_steps <= 1 and B <= 256:
        return _round_up(B, 8)              # single resident step, no batch pipeline
    b = _round_up(B, 128)
    steps = max(min_steps, _cdiv(b, max_tile))
    if min_steps > 1:
        steps = _round_up(steps, min_steps)
    return _round_up(_cdiv(b, steps), 128)


def mlp_forward(x, prepared_params, *, return_padded=False,
                max_tile=None, min_steps=None, vmem_limit_bytes=None):
    """x: (B, INPUT_DIM) float32.  prepared_params: output of prepare_params().

    Returns (B, OUTPUT_DIM) float32, or the raw lane-dense (B_pad, OUT_PAD) bf16
    slab if return_padded=True (avoids the slice re-read for fused consumers)."""
    w_in_bf, b_in, w_h_bf, b_h, w_out_p, b_out_p = prepared_params
    B, in_dim = x.shape
    num_mid = w_h_bf.shape[0]

    cfg = _chip_config()
    max_tile = cfg["max_tile"] if max_tile is None else max_tile
    min_steps = cfg["min_steps"] if min_steps is None else min_steps
    vmem_limit_bytes = cfg["vmem_limit"] if vmem_limit_bytes is None else vmem_limit_bytes

    tile_b = _choose_tile_b(B, max_tile=max_tile, min_steps=min_steps)
    n_steps = _cdiv(B, tile_b)
    B_pad = n_steps * tile_b

    x_bf = x.astype(jnp.bfloat16)
    if B_pad != B:
        x_bf = jnp.pad(x_bf, ((0, B_pad - B), (0, 0)))

    kernel = functools.partial(_mlp_kernel, num_mid_layers=num_mid)

    # Parameters are grid-invariant: single-buffer them (no extra VMEM or DMA).
    const_buf = pl.Buffered(1)

    flops = 2 * B_pad * (in_dim * HIDDEN_DIM
                         + num_mid * HIDDEN_DIM * HIDDEN_DIM
                         + HIDDEN_DIM * OUT_PAD)
    bytes_accessed = (x_bf.size * 2
                      + w_in_bf.size * 2 + b_in.size * 4
                      + w_h_bf.size * 2 + b_h.size * 4
                      + w_out_p.size * 2 + b_out_p.size * 4
                      + B_pad * OUT_PAD * 2)          # bf16 output slab

    out = pl.pallas_call(
        kernel,
        out_shape=jax.ShapeDtypeStruct((B_pad, OUT_PAD), jnp.bfloat16),
        grid_spec=pltpu.PrefetchScalarGridSpec(
            num_scalar_prefetch=0,
            grid=(n_steps,),
            in_specs=[
                # x: tiled along batch (double-buffered by default).
                pl.BlockSpec((tile_b, in_dim), lambda i: (i, 0)),
                # parameters: full blocks, constant index -> single-buffered.
                pl.BlockSpec((in_dim, HIDDEN_DIM), lambda i: (0, 0),
                             pipeline_mode=const_buf),
                pl.BlockSpec((1, HIDDEN_DIM), lambda i: (0, 0),
                             pipeline_mode=const_buf),
                pl.BlockSpec((num_mid, HIDDEN_DIM, HIDDEN_DIM),
                             lambda i: (0, 0, 0), pipeline_mode=const_buf),
                pl.BlockSpec((num_mid, 1, HIDDEN_DIM),
                             lambda i: (0, 0, 0), pipeline_mode=const_buf),
                pl.BlockSpec((HIDDEN_DIM, OUT_PAD), lambda i: (0, 0),
                             pipeline_mode=const_buf),
                pl.BlockSpec((1, OUT_PAD), lambda i: (0, 0),
                             pipeline_mode=const_buf),
            ],
            # TODO(synk): bump to pipeline_mode=pl.Buffered(3) only if a trace
            # shows the output writeback exposed on the critical path.
            out_specs=pl.BlockSpec((tile_b, OUT_PAD), lambda i: (i, 0)),
        ),
        compiler_params=pltpu.CompilerParams(
            dimension_semantics=("parallel",),
            vmem_limit_bytes=vmem_limit_bytes),
        cost_estimate=pl.CostEstimate(flops=flops, transcendentals=0,
                                      bytes_accessed=bytes_accessed),
    )(x_bf, w_in_bf, b_in, w_h_bf, b_h, w_out_p, b_out_p)

    if return_padded:
        return out
    # Note: this slice is a separate XLA op that re-reads the slab; callers that
    # can consume the padded bf16 slab should pass return_padded=True.
    return out[:B, :OUTPUT_DIM].astype(jnp.float32)


def init_params(key):
    """PyTorch nn.Linear default init: U(-1/sqrt(fan_in), +1/sqrt(fan_in)).
    Weights stored (in_features, out_features) so the kernel computes x @ W + b
    (== PyTorch x @ W.T + b with W of shape (out, in))."""
    n_mid = NUM_HIDDEN_LAYERS - 1
    keys = jax.random.split(key, 6)

    def uni(k, shape, fan_in):
        bound = 1.0 / jnp.sqrt(float(fan_in))
        return jax.random.uniform(k, shape, jnp.float32, -bound, bound)

    w_in = uni(keys[0], (INPUT_DIM, HIDDEN_DIM), INPUT_DIM)
    b_in = uni(keys[1], (1, HIDDEN_DIM), INPUT_DIM)
    w_h = uni(keys[2], (n_mid, HIDDEN_DIM, HIDDEN_DIM), HIDDEN_DIM)
    b_h = uni(keys[3], (n_mid, 1, HIDDEN_DIM), HIDDEN_DIM)
    w_out = uni(keys[4], (HIDDEN_DIM, OUTPUT_DIM), HIDDEN_DIM)
    b_out = uni(keys[5], (1, OUTPUT_DIM), HIDDEN_DIM)
    return (w_in, b_in, w_h, b_h, w_out, b_out)


def mlp_reference(x, params):
    """Pure-JAX reference mirroring the kernel numerics
    (bf16 matmuls, f32 accumulate/bias/ReLU, bf16 output store)."""
    w_in, b_in, w_h, b_h, w_out, b_out = params
    h = jnp.dot(x.astype(jnp.bfloat16), w_in.astype(jnp.bfloat16),
                preferred_element_type=jnp.float32)
    h = jnp.maximum(h + b_in, 0.0)
    for l in range(w_h.shape[0]):
        h = jnp.dot(h.astype(jnp.bfloat16), w_h[l].astype(jnp.bfloat16),
                    preferred_element_type=jnp.float32)
        h = jnp.maximum(h + b_h[l], 0.0)
    out = jnp.dot(h.astype(jnp.bfloat16), w_out.astype(jnp.bfloat16),
                  preferred_element_type=jnp.float32) + b_out
    return out.astype(jnp.bfloat16).astype(jnp.float32)


if __name__ == "__main__":
    key = jax.random.PRNGKey(0)
    k_params, k_x1, k_x2 = jax.random.split(key, 3)

    params = init_params(k_params)
    prepped = jax.tree_util.tree_map(jax.block_until_ready, prepare_params(params))

    # Small demo batch: single resident grid step.
    x_small = jax.random.normal(k_x1, (32, INPUT_DIM), jnp.float32)
    out_small = jax.block_until_ready(mlp_forward(x_small, prepped))
    ref_small = mlp_reference(x_small, params)
    assert out_small.shape == (32, OUTPUT_DIM)
    assert jnp.allclose(out_small, ref_small, atol=1e-2, rtol=1e-2), "mismatch (small batch)"

    # Larger batch with the default (chip-tuned) tiling.
    x_big = jax.random.normal(k_x2, (1024, INPUT_DIM), jnp.float32)
    out_big = jax.block_until_ready(mlp_forward(x_big, prepped))
    ref_big = mlp_reference(x_big, params)
    assert out_big.shape == (1024, OUTPUT_DIM)
    assert jnp.allclose(out_big, ref_big, atol=1e-2, rtol=1e-2), "mismatch (big batch)"

    # Force the multi-step pipelined path regardless of chip (8 steps of 128 rows).
    out_tiled = jax.block_until_ready(
        mlp_forward(x_big, prepped, max_tile=128, min_steps=2))
    assert out_tiled.shape == (1024, OUTPUT_DIM)
    assert jnp.allclose(out_tiled, ref_big, atol=1e-2, rtol=1e-2), "mismatch (tiled path)"

    print("KERNEL_OK")
</pallas_src>

<mosaic_0001>
module attributes {stable_mosaic.version = 11 : i64} {
  func.func @_mlp_kernel(%arg0: i32, %arg1: memref<128x11xbf16, #tpu.memory_space<vmem>>, %arg2: memref<11x256xbf16, #tpu.memory_space<vmem>>, %arg3: memref<1x256xf32, #tpu.memory_space<vmem>>, %arg4: memref<4x256x256xbf16, #tpu.memory_space<vmem>>, %arg5: memref<4x1x256xf32, #tpu.memory_space<vmem>>, %arg6: memref<256x128xbf16, #tpu.memory_space<vmem>>, %arg7: memref<1x128xf32, #tpu.memory_space<vmem>>, %arg8: memref<128x128xbf16, #tpu.memory_space<vmem>>) attributes {dimension_semantics = [#tpu.dimension_semantics<parallel>], iteration_bounds = array<i64: 1>, scalar_prefetch = 0 : i64, scratch_operands = 0 : i64, tpu.core_type = #tpu.core_type<tc>, window_params = [{transform_indices = @transform_0, window_bounds = array<i64: 128, 11>}, {pipeline_mode = #tpu.pipeline_mode<synchronous>, transform_indices = @transform_1, window_bounds = array<i64: 11, 256>}, {pipeline_mode = #tpu.pipeline_mode<synchronous>, transform_indices = @transform_2, window_bounds = array<i64: 1, 256>}, {pipeline_mode = #tpu.pipeline_mode<synchronous>, transform_indices = @transform_3, window_bounds = array<i64: 4, 256, 256>}, {pipeline_mode = #tpu.pipeline_mode<synchronous>, transform_indices = @transform_4, window_bounds = array<i64: 4, 1, 256>}, {pipeline_mode = #tpu.pipeline_mode<synchronous>, transform_indices = @transform_5, window_bounds = array<i64: 256, 128>}, {pipeline_mode = #tpu.pipeline_mode<synchronous>, transform_indices = @transform_6, window_bounds = array<i64: 1, 128>}, {transform_indices = @transform_7, window_bounds = array<i64: 128, 128>}]} {
    %c0 = arith.constant 0 : index
    %c0_0 = arith.constant 0 : index
    %0 = vector.load %arg1[%c0, %c0_0] : memref<128x11xbf16, #tpu.memory_space<vmem>>, vector<128x11xbf16>
    %c0_1 = arith.constant 0 : index
    %c0_2 = arith.constant 0 : index
    %1 = vector.load %arg2[%c0_1, %c0_2] : memref<11x256xbf16, #tpu.memory_space<vmem>>, vector<11x256xbf16>
    %cst = arith.constant dense<0.000000e+00> : vector<128x256xf32>
    %2 = tpu.matmul %0, %1, %cst {dimension_numbers = #tpu.dot_dimension_numbers<[1], [0], [0], [1], [0, 0, 1, 1], [], []>} : vector<128x11xbf16>, vector<11x256xbf16>, vector<128x256xf32> -> vector<128x256xf32>
    %c0_3 = arith.constant 0 : index
    %c0_4 = arith.constant 0 : index
    %3 = vector.load %arg3[%c0_3, %c0_4] : memref<1x256xf32, #tpu.memory_space<vmem>>, vector<1x256xf32>
    %4 = vector.broadcast %3 : vector<1x256xf32> to vector<128x256xf32>
    %5 = arith.addf %2, %4 : vector<128x256xf32>
    %cst_5 = arith.constant 0.000000e+00 : f32
    %6 = vector.broadcast %cst_5 : f32 to vector<128x256xf32>
    %7 = arith.maximumf %5, %6 : vector<128x256xf32>
    %8 = arith.truncf %7 : vector<128x256xf32> to vector<128x256xbf16>
    %c0_6 = arith.constant 0 : index
    %c0_7 = arith.constant 0 : index
    %c0_8 = arith.constant 0 : index
    %9 = vector.load %arg4[%c0_6, %c0_7, %c0_8] : memref<4x256x256xbf16, #tpu.memory_space<vmem>>, vector<1x256x256xbf16>
    %10 = vector.shape_cast %9 : vector<1x256x256xbf16> to vector<256x256xbf16>
    %cst_9 = arith.constant dense<0.000000e+00> : vector<128x256xf32>
    %11 = tpu.matmul %8, %10, %cst_9 {dimension_numbers = #tpu.dot_dimension_numbers<[1], [0], [0], [1], [0, 0, 1, 1], [], []>} : vector<128x256xbf16>, vector<256x256xbf16>, vector<128x256xf32> -> vector<128x256xf32>
    %c0_10 = arith.constant 0 : index
    %c0_11 = arith.constant 0 : index
    %c0_12 = arith.constant 0 : index
    %12 = vector.load %arg5[%c0_10, %c0_11, %c0_12] : memref<4x1x256xf32, #tpu.memory_space<vmem>>, vector<1x1x256xf32>
    %13 = vector.shape_cast %12 : vector<1x1x256xf32> to vector<1x256xf32>
    %14 = vector.broadcast %13 : vector<1x256xf32> to vector<128x256xf32>
    %15 = arith.addf %11, %14 : vector<128x256xf32>
    %cst_13 = arith.constant 0.000000e+00 : f32
    %16 = vector.broadcast %cst_13 : f32 to vector<128x256xf32>
    %17 = arith.maximumf %15, %16 : vector<128x256xf32>
    %18 = arith.truncf %17 : vector<128x256xf32> to vector<128x256xbf16>
    %c1 = arith.constant 1 : index
    %c0_14 = arith.constant 0 : index
    %c0_15 = arith.constant 0 : index
    %19 = vector.load %arg4[%c1, %c0_14, %c0_15] : memref<4x256x256xbf16, #tpu.memory_space<vmem>>, vector<1x256x256xbf16>
    %20 = vector.shape_cast %19 : vector<1x256x256xbf16> to vector<256x256xbf16>
    %cst_16 = arith.constant dense<0.000000e+00> : vector<128x256xf32>
    %21 = tpu.matmul %18, %20, %cst_16 {dimension_numbers = #tpu.dot_dimension_numbers<[1], [0], [0], [1], [0, 0, 1, 1], [], []>} : vector<128x256xbf16>, vector<256x256xbf16>, vector<128x256xf32> -> vector<128x256xf32>
    %c1_17 = arith.constant 1 : index
    %c0_18 = arith.constant 0 : index
    %c0_19 = arith.constant 0 : index
    %22 = vector.load %arg5[%c1_17, %c0_18, %c0_19] : memref<4x1x256xf32, #tpu.memory_space<vmem>>, vector<1x1x256xf32>
    %23 = vector.shape_cast %22 : vector<1x1x256xf32> to vector<1x256xf32>
    %24 = vector.broadcast %23 : vector<1x256xf32> to vector<128x256xf32>
    %25 = arith.addf %21, %24 : vector<128x256xf32>
    %cst_20 = arith.constant 0.000000e+00 : f32
    %26 = vector.broadcast %cst_20 : f32 to vector<128x256xf32>
    %27 = arith.maximumf %25, %26 : vector<128x256xf32>
    %28 = arith.truncf %27 : vector<128x256xf32> to vector<128x256xbf16>
    %c2 = arith.constant 2 : index
    %c0_21 = arith.constant 0 : index
    %c0_22 = arith.constant 0 : index
    %29 = vector.load %arg4[%c2, %c0_21, %c0_22] : memref<4x256x256xbf16, #tpu.memory_space<vmem>>, vector<1x256x256xbf16>
    %30 = vector.shape_cast %29 : vector<1x256x256xbf16> to vector<256x256xbf16>
    %cst_23 = arith.constant dense<0.000000e+00> : vector<128x256xf32>
    %31 = tpu.matmul %28, %30, %cst_23 {dimension_numbers = #tpu.dot_dimension_numbers<[1], [0], [0], [1], [0, 0, 1, 1], [], []>} : vector<128x256xbf16>, vector<256x256xbf16>, vector<128x256xf32> -> vector<128x256xf32>
    %c2_24 = arith.constant 2 : index
    %c0_25 = arith.constant 0 : index
    %c0_26 = arith.constant 0 : index
    %32 = vector.load %arg5[%c2_24, %c0_25, %c0_26] : memref<4x1x256xf32, #tpu.memory_space<vmem>>, vector<1x1x256xf32>
    %33 = vector.shape_cast %32 : vector<1x1x256xf32> to vector<1x256xf32>
    %34 = vector.broadcast %33 : vector<1x256xf32> to vector<128x256xf32>
    %35 = arith.addf %31, %34 : vector<128x256xf32>
    %cst_27 = arith.constant 0.000000e+00 : f32
    %36 = vector.broadcast %cst_27 : f32 to vector<128x256xf32>
    %37 = arith.maximumf %35, %36 : vector<128x256xf32>
    %38 = arith.truncf %37 : vector<128x256xf32> to vector<128x256xbf16>
    %c3 = arith.constant 3 : index
    %c0_28 = arith.constant 0 : index
    %c0_29 = arith.constant 0 : index
    %39 = vector.load %arg4[%c3, %c0_28, %c0_29] : memref<4x256x256xbf16, #tpu.memory_space<vmem>>, vector<1x256x256xbf16>
    %40 = vector.shape_cast %39 : vector<1x256x256xbf16> to vector<256x256xbf16>
    %cst_30 = arith.constant dense<0.000000e+00> : vector<128x256xf32>
    %41 = tpu.matmul %38, %40, %cst_30 {dimension_numbers = #tpu.dot_dimension_numbers<[1], [0], [0], [1], [0, 0, 1, 1], [], []>} : vector<128x256xbf16>, vector<256x256xbf16>, vector<128x256xf32> -> vector<128x256xf32>
    %c3_31 = arith.constant 3 : index
    %c0_32 = arith.constant 0 : index
    %c0_33 = arith.constant 0 : index
    %42 = vector.load %arg5[%c3_31, %c0_32, %c0_33] : memref<4x1x256xf32, #tpu.memory_space<vmem>>, vector<1x1x256xf32>
    %43 = vector.shape_cast %42 : vector<1x1x256xf32> to vector<1x256xf32>
    %44 = vector.broadcast %43 : vector<1x256xf32> to vector<128x256xf32>
    %45 = arith.addf %41, %44 : vector<128x256xf32>
    %cst_34 = arith.constant 0.000000e+00 : f32
    %46 = vector.broadcast %cst_34 : f32 to vector<128x256xf32>
    %47 = arith.maximumf %45, %46 : vector<128x256xf32>
    %48 = arith.truncf %47 : vector<128x256xf32> to vector<128x256xbf16>
    %c0_35 = arith.constant 0 : index
    %c0_36 = arith.constant 0 : index
    %49 = vector.load %arg6[%c0_35, %c0_36] : memref<256x128xbf16, #tpu.memory_space<vmem>>, vector<256x128xbf16>
    %cst_37 = arith.constant dense<0.000000e+00> : vector<128x128xf32>
    %50 = tpu.matmul %48, %49, %cst_37 {dimension_numbers = #tpu.dot_dimension_numbers<[1], [0], [0], [1], [0, 0, 1, 1], [], []>} : vector<128x256xbf16>, vector<256x128xbf16>, vector<128x128xf32> -> vector<128x128xf32>
    %c0_38 = arith.constant 0 : index
    %c0_39 = arith.constant 0 : index
    %51 = vector.load %arg7[%c0_38, %c0_39] : memref<1x128xf32, #tpu.memory_space<vmem>>, vector<1x128xf32>
    %52 = vector.broadcast %51 : vector<1x128xf32> to vector<128x128xf32>
    %53 = arith.addf %50, %52 : vector<128x128xf32>
    %54 = arith.truncf %53 : vector<128x128xf32> to vector<128x128xbf16>
    %c0_40 = arith.constant 0 : index
    %c0_41 = arith.constant 0 : index
    %55 = vector.load %arg8[%c0_40, %c0_41] : memref<128x128xbf16, #tpu.memory_space<vmem>>, vector<128x128xbf16>
    tpu.vector_store %arg8[%c0_40, %c0_41], %54 {strides = array<i32>} : memref<128x128xbf16, #tpu.memory_space<vmem>>, vector<128x128xbf16>,
    return
  }
  func.func @transform_0(%arg0: i32) -> (i32, i32) {
    %c0_i32 = arith.constant 0 : i32
    %c0_i32_0 = arith.constant 0 : i32
    return %arg0, %c0_i32 : i32, i32
  }
  func.func @transform_1(%arg0: i32) -> (i32, i32) {
    %c0_i32 = arith.constant 0 : i32
    %c0_i32_0 = arith.constant 0 : i32
    %c0_i32_1 = arith.constant 0 : i32
    return %c0_i32, %c0_i32_0 : i32, i32
  }
  func.func @transform_2(%arg0: i32) -> (i32, i32) {
    %c0_i32 = arith.constant 0 : i32
    %c0_i32_0 = arith.constant 0 : i32
    %c0_i32_1 = arith.constant 0 : i32
    return %c0_i32, %c0_i32_0 : i32, i32
  }
  func.func @transform_3(%arg0: i32) -> (i32, i32, i32) {
    %c0_i32 = arith.constant 0 : i32
    %c0_i32_0 = arith.constant 0 : i32
    %c0_i32_1 = arith.constant 0 : i32
    %c0_i32_2 = arith.constant 0 : i32
    return %c0_i32, %c0_i32_0, %c0_i32_1 : i32, i32, i32
  }
  func.func @transform_4(%arg0: i32) -> (i32, i32, i32) {
    %c0_i32 = arith.constant 0 : i32
    %c0_i32_0 = arith.constant 0 : i32
    %c0_i32_1 = arith.constant 0 : i32
    %c0_i32_2 = arith.constant 0 : i32
    return %c0_i32, %c0_i32_0, %c0_i32_1 : i32, i32, i32
  }
  func.func @transform_5(%arg0: i32) -> (i32, i32) {
    %c0_i32 = arith.constant 0 : i32
    %c0_i32_0 = arith.constant 0 : i32
    %c0_i32_1 = arith.constant 0 : i32
    return %c0_i32, %c0_i32_0 : i32, i32
  }
  func.func @transform_6(%arg0: i32) -> (i32, i32) {
    %c0_i32 = arith.constant 0 : i32
    %c0_i32_0 = arith.constant 0 : i32
    %c0_i32_1 = arith.constant 0 : i32
    return %c0_i32, %c0_i32_0 : i32, i32
  }
  func.func @transform_7(%arg0: i32) -> (i32, i32) {
    %c0_i32 = arith.constant 0 : i32
    %c0_i32_0 = arith.constant 0 : i32
    return %arg0, %c0_i32 : i32, i32
  }
}

</mosaic_0001>

<llo_original>
// kernel: tpu_custom_call.1
$region0: #{tpu_custom_call.1}
  #allocation0 [shape = 'u32[]', space=smem, size = 0x4, offset = 0x4, fixed_abs, tag = 'smem constant byte address 0x4 - core index']
  #allocation1 [shape = 'u32[144,128]{1,0:T(1,128)}', space=vmem, size = 0x12000, scoped, tag = 'internal scratch']
  %s0 = inlined_call_operand.vmem [shape: bf16[128,11], index: 0, kind: input, shape index: {}]
  %s1 = inlined_call_operand.vmem [shape: bf16[11,256], index: 1, kind: input, shape index: {}]
  %s2 = inlined_call_operand.vmem [shape: f32[1,256], index: 2, kind: input, shape index: {}]
  %s3 = inlined_call_operand.hbm [shape: bf16[4,256,256], index: 3, kind: input, shape index: {}]
  %s4 = inlined_call_operand.vmem [shape: f32[4,1,256], index: 4, kind: input, shape index: {}]
  %s5 = inlined_call_operand.hbm [shape: bf16[256,128], index: 5, kind: input, shape index: {}]
  %s6 = inlined_call_operand.vmem [shape: f32[1,128], index: 6, kind: input, shape index: {}]
  %s7 = inlined_call_operand.hbm [shape: bf16[128,128], index: 7, kind: output, shape index: {}]
  %s8 = sld [smem:[#allocation0]]
  $region46: #{tpu_custom_call.1} parent=0
    _
  %s10 = ssub.s32 1, %s8
  %s11 = scalar_select 0, %s10, %s8
  $region1: #{tpu_custom_call.1} parent=0
    #allocation2 [shape = 'u8[524288]{0}', space=vmem, size = 0x80000, scoped, tag = 'input window, operand 3, single buffered']
    #allocation3 [shape = 's32[1]{0}', space=sflag, size = 0x4, scoped, tag = 'scoped memory for tpu_custom_call.1']
    #allocation4 [shape = 's32[1]{0}', space=sflag, size = 0x4, scoped, tag = 'scoped memory for tpu_custom_call.1']
    #allocation5 [shape = 'u8[65536]{0}', space=vmem, size = 0x10000, scoped, tag = 'input window, operand 5, single buffered']
    #allocation6 [shape = 's32[1]{0}', space=sflag, size = 0x4, scoped, tag = 'scoped memory for tpu_custom_call.1']
    #allocation7 [shape = 'u8[32768]{0}', space=vmem, size = 0x8000, scoped, tag = 'output window, operand 0, single buffered']
    %12 = vsyncpa [#allocation3], 0
    %13 = vsyncpa [#allocation6], 0
    %14 = vsyncpa [#allocation4], 0
    // Predicated region
    $region2: #{tpu_custom_call.1} parent=1 // pred_check
      _
    $region3: #{tpu_custom_call.1} parent=1 // pred_check_branch
      %16 = sbr.rel (0) target = $region5
    $region4: #{tpu_custom_call.1} parent=1 // pred_region
      _
    $region5: #{tpu_custom_call.1} parent=1 // pred_fallthru
      _
    // Predicated region
    $region6: #{tpu_custom_call.1} parent=1 // pred_check
      _
    $region7: #{tpu_custom_call.1} parent=1 // pred_check_branch
      %18 = sbr.rel (0) target = $region9
    $region8: #{tpu_custom_call.1} parent=1 // pred_region
      _
    $region9: #{tpu_custom_call.1} parent=1 // pred_fallthru
      _
    // Predicated region
    $region10: #{tpu_custom_call.1} parent=1 // pred_check
      _
    $region11: #{tpu_custom_call.1} parent=1 // pred_check_branch
      %20 = sbr.rel (0) target = $region13
    $region12: #{tpu_custom_call.1} parent=1 // pred_region
      _
    $region13: #{tpu_custom_call.1} parent=1 // pred_fallthru
      _
    // Predicated region
    $region14: #{tpu_custom_call.1} parent=1 // pred_check
      _
    $region15: #{tpu_custom_call.1} parent=1 // pred_check_branch
      %22 = sbr.rel (0) target = $region17
    $region16: #{tpu_custom_call.1} parent=1 // pred_region
      %s24 = ssub.s32 16384, 16384
      %25 = vsyncadd [#allocation3], %s24
      %s26 = sshll.u32 [#allocation2], 4
      %s27 = int_to_ptr.vmem [resolvable:$true] %s26
      %32 = dma.hbm_to_vmem [thread:$0]  %s3, 16384, %s27, [#allocation3], 128, 128, 8
    $region17: #{tpu_custom_call.1} parent=1 // pred_fallthru
      _
    // Predicated region
    $region18: #{tpu_custom_call.1} parent=1 // pred_check
      _
    $region19: #{tpu_custom_call.1} parent=1 // pred_check_branch
      %34 = sbr.rel (0) target = $region21
    $region20: #{tpu_custom_call.1} parent=1 // pred_region
      _
    $region21: #{tpu_custom_call.1} parent=1 // pred_fallthru
      _
    // Predicated region
    $region22: #{tpu_custom_call.1} parent=1 // pred_check
      _
    $region23: #{tpu_custom_call.1} parent=1 // pred_check_branch
      %36 = sbr.rel (0) target = $region25
    $region24: #{tpu_custom_call.1} parent=1 // pred_region
      %s38 = ssub.s32 2048, 2048
      %39 = vsyncadd [#allocation6], %s38
      %s40 = sshll.u32 [#allocation5], 4
      %s41 = int_to_ptr.vmem [resolvable:$true] %s40
      %46 = dma.hbm_to_vmem [thread:$0]  %s5, 2048, %s41, [#allocation6], 64, 64, 4
    $region25: #{tpu_custom_call.1} parent=1 // pred_fallthru
      _
    // Predicated region
    $region26: #{tpu_custom_call.1} parent=1 // pred_check
      _
    $region27: #{tpu_custom_call.1} parent=1 // pred_check_branch
      %48 = sbr.rel (0) target = $region29
    $region28: #{tpu_custom_call.1} parent=1 // pred_region
      _
    $region29: #{tpu_custom_call.1} parent=1 // pred_fallthru
      _
    // Predicated region
    $region30: #{tpu_custom_call.1} parent=1 // pred_check
      _
    $region31: #{tpu_custom_call.1} parent=1 // pred_check_branch
      %50 = sbr.rel (0) target = $region33
    $region32: #{tpu_custom_call.1} parent=1 // pred_region
      %51 = dma.done [#allocation3], 16384
    $region33: #{tpu_custom_call.1} parent=1 // pred_fallthru
      _
    // Predicated region
    $region34: #{tpu_custom_call.1} parent=1 // pred_check
      _
    $region35: #{tpu_custom_call.1} parent=1 // pred_check_branch
      %53 = sbr.rel (0) target = $region37
    $region36: #{tpu_custom_call.1} parent=1 // pred_region
      %54 = dma.done [#allocation6], 2048
    $region37: #{tpu_custom_call.1} parent=1 // pred_fallthru
      _
    %v56 = vld [vmem:[%s0] sm:$0xf]
    %v57 = vld [vmem:[%s0 + $0x4] sm:$0xf]
    %v58 = vld [vmem:[%s0 + $0x8] sm:$0xf]
    %v59 = vld [vmem:[%s0 + $0xc] sm:$0xf]
    %v60 = vld [vmem:[%s0 + $0x10] sm:$0xf]
    %v61 = vld [vmem:[%s0 + $0x14] sm:$0xf]
    %v62 = vld [vmem:[%s0 + $0x18] sm:$0xf]
    %v63 = vld [vmem:[%s0 + $0x1c] sm:$0xf]
    %v64 = vld [vmem:[%s0 + $0x20] sm:$0xf]
    %v65 = vld [vmem:[%s0 + $0x24] sm:$0xf]
    %v66 = vld [vmem:[%s0 + $0x28] sm:$0xf]
    %v67 = vld [vmem:[%s0 + $0x2c] sm:$0xf]
    %v68 = vld [vmem:[%s0 + $0x30] sm:$0xf]
    %v69 = vld [vmem:[%s0 + $0x34] sm:$0xf]
    %v70 = vld [vmem:[%s0 + $0x38] sm:$0xf]
    %v71 = vld [vmem:[%s0 + $0x3c] sm:$0xf]
    %v72 = vld [vmem:[%s1] sm:$0xff]
    %v73 = vld [vmem:[%s1 + $0x8] sm:$0x33]
    %v74 = vld [vmem:[%s2] sm:$0x3]
    %v76 = vlaneseq
    %v77 = vshrl.u32 %v76, 7
    %v78 = vsub.s32 0, %v77
    %v79 = vrot.slane %v74, %v78
    %v80 = vlaneseq
    %v81 = vshrl.u32 %v80, 7
    %v82 = vsub.s32 1, %v81
    %v83 = vrot.slane %v74, %v82
    %v102 = vunpack.c.l.b16 %v56
    %v103 = vunpack.c.l.b16 %v57
    %v104 = vunpack.c.l.b16 %v58
    %v105 = vunpack.c.l.b16 %v59
    %v106 = vunpack.c.l.b16 %v60
    %v107 = vunpack.c.l.b16 %v61
    %v108 = vunpack.c.l.b16 %v62
    %v109 = vunpack.c.l.b16 %v63
    %v110 = vunpack.c.l.b16 %v64
    %v111 = vunpack.c.l.b16 %v65
    %v112 = vunpack.c.l.b16 %v66
    %v113 = vunpack.c.l.b16 %v67
    %v114 = vunpack.c.l.b16 %v68
    %v115 = vunpack.c.l.b16 %v69
    %v116 = vunpack.c.l.b16 %v70
    %v117 = vunpack.c.l.b16 %v71
    %v118 = vpack.c.b16 %v103, %v102
    %v119 = vpack.c.b16 %v105, %v104
    %v120 = vpack.c.b16 %v107, %v106
    %v121 = vpack.c.b16 %v109, %v108
    %v122 = vpack.c.b16 %v111, %v110
    %v123 = vpack.c.b16 %v113, %v112
    %v124 = vpack.c.b16 %v115, %v114
    %v125 = vpack.c.b16 %v117, %v116
    %v128 = vunpack.c.l.b16 %v72
    %v129 = vunpack.c.h.b16 %v72
    %v130 = vunpack.c.l.b16 %v73
    %v131 = vunpack.c.h.b16 %v73
    %v132 = vpack.c.b16 %v130, %v128
    %v133 = vpack.c.b16 %v131, %v129
    %vm134 = vcmask 89088
    %v136 = vsel %vm134, %v118, 0
    %v139 = vsel %vm134, %v119, 0
    %v142 = vsel %vm134, %v120, 0
    %v145 = vsel %vm134, %v121, 0
    %v148 = vsel %vm134, %v122, 0
    %v151 = vsel %vm134, %v123, 0
    %v154 = vsel %vm134, %v124, 0
    %v157 = vsel %vm134, %v125, 0
    %vm159 = vcmask 1044480
    %vm160 = vcmask 1045504
    %v161 = vsel %vm159, 4294967295, 65535
    %v162 = vsel %vm160, %v161, 0
    %v164 = vand.u32 %v132, %v162
    %v167 = vand.u32 %v133, %v162
    %169 = vmatprep.subr.bf16.mxu0 %v167
    %170 = vmatpush1.bf16.msra.mxu0 %v164
    %171 = vmatprep.subr.bf16.mxu0 0
    %172 = vmatpush1.bf16.msra.mxu0 0
    %173 = vmatprep.subr.bf16.mxu0 0
    %174 = vmatpush1.bf16.msra.mxu0 0
    %175 = vmatprep.subr.bf16.mxu0 0
    %176 = vmatpush1.bf16.msra.mxu0 0
    %177 = vmatprep.subr.bf16.mxu0 0
    %178 = vmatpush1.bf16.msra.mxu0 0
    %179 = vmatprep.subr.bf16.mxu0 0
    %180 = vmatpush1.bf16.msra.mxu0 0
    %181 = vmatprep.subr.bf16.mxu0 0
    %182 = vmatpush1.bf16.msra.mxu0 0
    %183 = vmatprep.subr.bf16.mxu0 0
    %184 = vmatpush1.bf16.msra.mxu0 0
    %185 = vmatprep.subr.bf16.mxu0 0
    %186 = vmatpush1.bf16.msra.mxu0 0
    %187 = vmatprep.subr.bf16.mxu0 0
    %188 = vmatpush1.bf16.msra.mxu0 0
    %189 = vmatprep.subr.bf16.mxu0 0
    %190 = vmatpush1.bf16.msra.mxu0 0
    %191 = vmatprep.subr.bf16.mxu0 0
    %192 = vmatpush1.bf16.msra.mxu0 0
    %193 = vmatprep.subr.bf16.mxu0 0
    %194 = vmatpush1.bf16.msra.mxu0 0
    %195 = vmatprep.subr.bf16.mxu0 0
    %196 = vmatpush1.bf16.msra.mxu0 0
    %197 = vmatprep.subr.bf16.mxu0 0
    %198 = vmatpush1.bf16.msra.mxu0 0
    %199 = vmatprep.subr.bf16.mxu0 0
    %200 = vmatpush1.bf16.msra.mxu0 0
    %201 = vmatprep.mubr.bf16.mxu0 0
    %202 = vmatmul.mubr.bf16.gmra.mrb[0].mxu0 %v136
    %v203 = vpop.f32.mrb[0].mxu0
    %v204 = vadd.f32 %v79, %v203
    %v205 = vpop.f32.mrb[0].mxu0
    %v206 = vadd.f32 %v83, %v205
    %v207 = vpop.f32.mrb[0].mxu0
    %v208 = vadd.f32 %v79, %v207
    %v209 = vpop.f32.mrb[0].mxu0
    %v210 = vadd.f32 %v83, %v209
    %211 = vmatprep.mubr.bf16.mxu0 0
    %212 = vmatmul.mubr.bf16.gmra.mrb[0].mxu0 %v139
    %v213 = vpop.f32.mrb[0].mxu0
    %v214 = vadd.f32 %v79, %v213
    %v215 = vpop.f32.mrb[0].mxu0
    %v216 = vadd.f32 %v83, %v215
    %v217 = vpop.f32.mrb[0].mxu0
    %v218 = vadd.f32 %v79, %v217
    %v219 = vpop.f32.mrb[0].mxu0
    %v220 = vadd.f32 %v83, %v219
    %221 = vmatprep.mubr.bf16.mxu0 0
    %222 = vmatmul.mubr.bf16.gmra.mrb[0].mxu0 %v142
    %v223 = vpop.f32.mrb[0].mxu0
    %v224 = vadd.f32 %v79, %v223
    %v225 = vpop.f32.mrb[0].mxu0
    %v226 = vadd.f32 %v83, %v225
    %v227 = vpop.f32.mrb[0].mxu0
    %v228 = vadd.f32 %v79, %v227
    %v229 = vpop.f32.mrb[0].mxu0
    %v230 = vadd.f32 %v83, %v229
    %231 = vmatprep.mubr.bf16.mxu0 0
    %232 = vmatmul.mubr.bf16.gmra.mrb[0].mxu0 %v145
    %v233 = vpop.f32.mrb[0].mxu0
    %v234 = vadd.f32 %v79, %v233
    %v235 = vpop.f32.mrb[0].mxu0
    %v236 = vadd.f32 %v83, %v235
    %v237 = vpop.f32.mrb[0].mxu0
    %v238 = vadd.f32 %v79, %v237
    %v239 = vpop.f32.mrb[0].mxu0
    %v240 = vadd.f32 %v83, %v239
    %241 = vmatprep.mubr.bf16.mxu0 0
    %242 = vmatmul.mubr.bf16.gmra.mrb[0].mxu0 %v148
    %v243 = vpop.f32.mrb[0].mxu0
    %v244 = vadd.f32 %v79, %v243
    %v245 = vpop.f32.mrb[0].mxu0
    %v246 = vadd.f32 %v83, %v245
    %v247 = vpop.f32.mrb[0].mxu0
    %v248 = vadd.f32 %v79, %v247
    %v249 = vpop.f32.mrb[0].mxu0
    %v250 = vadd.f32 %v83, %v249
    %251 = vmatprep.mubr.bf16.mxu0 0
    %252 = vmatmul.mubr.bf16.gmra.mrb[0].mxu0 %v151
    %v253 = vpop.f32.mrb[0].mxu0
    %v254 = vadd.f32 %v79, %v253
    %v255 = vpop.f32.mrb[0].mxu0
    %v256 = vadd.f32 %v83, %v255
    %v257 = vpop.f32.mrb[0].mxu0
    %v258 = vadd.f32 %v79, %v257
    %v259 = vpop.f32.mrb[0].mxu0
    %v260 = vadd.f32 %v83, %v259
    %261 = vmatprep.mubr.bf16.mxu0 0
    %262 = vmatmul.mubr.bf16.gmra.mrb[0].mxu0 %v154
    %v263 = vpop.f32.mrb[0].mxu0
    %v264 = vadd.f32 %v79, %v263
    %v265 = vpop.f32.mrb[0].mxu0
    %v266 = vadd.f32 %v83, %v265
    %v267 = vpop.f32.mrb[0].mxu0
    %v268 = vadd.f32 %v79, %v267
    %v269 = vpop.f32.mrb[0].mxu0
    %v270 = vadd.f32 %v83, %v269
    %271 = vmatprep.mubr.bf16.mxu0 0
    %272 = vmatmul.mubr.bf16.gmra.mrb[0].mxu0 %v157
    %v273 = vpop.f32.mrb[0].mxu0
    %v274 = vadd.f32 %v79, %v273
    %v275 = vpop.f32.mrb[0].mxu0
    %v276 = vadd.f32 %v83, %v275
    %v277 = vpop.f32.mrb[0].mxu0
    %v278 = vadd.f32 %v79, %v277
    %v279 = vpop.f32.mrb[0].mxu0
    %v280 = vadd.f32 %v83, %v279
    %281 = vdwg.mxu0
    %v282 = vmax.f32 %v204, 0.0
    %v283 = vmax.f32 %v206, 0.0
    %v284 = vmax.f32 %v208, 0.0
    %v285 = vmax.f32 %v210, 0.0
    %v286 = vmax.f32 %v214, 0.0
    %v287 = vmax.f32 %v216, 0.0
    %v288 = vmax.f32 %v218, 0.0
    %v289 = vmax.f32 %v220, 0.0
    %v290 = vmax.f32 %v224, 0.0
    %v291 = vmax.f32 %v226, 0.0
    %v292 = vmax.f32 %v228, 0.0
    %v293 = vmax.f32 %v230, 0.0
    %v294 = vmax.f32 %v234, 0.0
    %v295 = vmax.f32 %v236, 0.0
    %v296 = vmax.f32 %v238, 0.0
    %v297 = vmax.f32 %v240, 0.0
    %v298 = vmax.f32 %v244, 0.0
    %v299 = vmax.f32 %v246, 0.0
    %v300 = vmax.f32 %v248, 0.0
    %v301 = vmax.f32 %v250, 0.0
    %v302 = vmax.f32 %v254, 0.0
    %v303 = vmax.f32 %v256, 0.0
    %v304 = vmax.f32 %v258, 0.0
    %v305 = vmax.f32 %v260, 0.0
    %v306 = vmax.f32 %v264, 0.0
    %v307 = vmax.f32 %v266, 0.0
    %v308 = vmax.f32 %v268, 0.0
    %v309 = vmax.f32 %v270, 0.0
    %v310 = vmax.f32 %v274, 0.0
    %v311 = vmax.f32 %v276, 0.0
    %v312 = vmax.f32 %v278, 0.0
    %v313 = vmax.f32 %v280, 0.0
    %v314 = vpack.c.bf16 %v284, %v282
    %v315 = vpack.c.bf16 %v285, %v283
    %v316 = vpack.c.bf16 %v288, %v286
    %v317 = vpack.c.bf16 %v289, %v287
    %v318 = vpack.c.bf16 %v292, %v290
    %v319 = vpack.c.bf16 %v293, %v291
    %v320 = vpack.c.bf16 %v296, %v294
    %v321 = vpack.c.bf16 %v297, %v295
    %v322 = vpack.c.bf16 %v300, %v298
    %v323 = vpack.c.bf16 %v301, %v299
    %v324 = vpack.c.bf16 %v304, %v302
    %v325 = vpack.c.bf16 %v305, %v303
    %v326 = vpack.c.bf16 %v308, %v306
    %v327 = vpack.c.bf16 %v309, %v307
    %v328 = vpack.c.bf16 %v312, %v310
    %v329 = vpack.c.bf16 %v313, %v311
    %v330 = vld [vmem:[#allocation2] sm:$0xff]
    %v331 = vld [vmem:[#allocation2 + $0x8] sm:$0xff]
    %v332 = vld [vmem:[#allocation2 + $0x10] sm:$0xff]
    %v333 = vld [vmem:[#allocation2 + $0x18] sm:$0xff]
    %v334 = vld [vmem:[#allocation2 + $0x20] sm:$0xff]
    %v335 = vld [vmem:[#allocation2 + $0x28] sm:$0xff]
    %v336 = vld [vmem:[#allocation2 + $0x30] sm:$0xff]
    %v337 = vld [vmem:[#allocation2 + $0x38] sm:$0xff]
    %v338 = vld [vmem:[#allocation2 + $0x40] sm:$0xff]
    %v339 = vld [vmem:[#allocation2 + $0x48] sm:$0xff]
    %v340 = vld [vmem:[#allocation2 + $0x50] sm:$0xff]
    %v341 = vld [vmem:[#allocation2 + $0x58] sm:$0xff]
    %v342 = vld [vmem:[#allocation2 + $0x60] sm:$0xff]
    %v343 = vld [vmem:[#allocation2 + $0x68] sm:$0xff]
    %v344 = vld [vmem:[#allocation2 + $0x70] sm:$0xff]
    %v345 = vld [vmem:[#allocation2 + $0x78] sm:$0xff]
    %v346 = vld [vmem:[#allocation2 + $0x80] sm:$0xff]
    %v347 = vld [vmem:[#allocation2 + $0x88] sm:$0xff]
    %v348 = vld [vmem:[#allocation2 + $0x90] sm:$0xff]
    %v349 = vld [vmem:[#allocation2 + $0x98] sm:$0xff]
    %v350 = vld [vmem:[#allocation2 + $0xa0] sm:$0xff]
    %v351 = vld [vmem:[#allocation2 + $0xa8] sm:$0xff]
    %v352 = vld [vmem:[#allocation2 + $0xb0] sm:$0xff]
    %v353 = vld [vmem:[#allocation2 + $0xb8] sm:$0xff]
    %v354 = vld [vmem:[#allocation2 + $0xc0] sm:$0xff]
    %v355 = vld [vmem:[#allocation2 + $0xc8] sm:$0xff]
    %v356 = vld [vmem:[#allocation2 + $0xd0] sm:$0xff]
    %v357 = vld [vmem:[#allocation2 + $0xd8] sm:$0xff]
    %v358 = vld [vmem:[#allocation2 + $0xe0] sm:$0xff]
    %v359 = vld [vmem:[#allocation2 + $0xe8] sm:$0xff]
    %v360 = vld [vmem:[#allocation2 + $0xf0] sm:$0xff]
    %v361 = vld [vmem:[#allocation2 + $0xf8] sm:$0xff]
    %v362 = vld [vmem:[%s4] sm:$0x3]
    %v364 = vlaneseq
    %v365 = vshrl.u32 %v364, 7
    %v366 = vsub.s32 0, %v365
    %v367 = vrot.slane %v362, %v366
    %v368 = vlaneseq
    %v369 = vshrl.u32 %v368, 7
    %v370 = vsub.s32 1, %v369
    %v371 = vrot.slane %v362, %v370
    %v406 = vunpack.c.l.b16 %v330
    %v407 = vunpack.c.h.b16 %v330
    %v408 = vunpack.c.l.b16 %v331
    %v409 = vunpack.c.h.b16 %v331
    %v410 = vunpack.c.l.b16 %v332
    %v411 = vunpack.c.h.b16 %v332
    %v412 = vunpack.c.l.b16 %v333
    %v413 = vunpack.c.h.b16 %v333
    %v414 = vunpack.c.l.b16 %v334
    %v415 = vunpack.c.h.b16 %v334
    %v416 = vunpack.c.l.b16 %v335
    %v417 = vunpack.c.h.b16 %v335
    %v418 = vunpack.c.l.b16 %v336
    %v419 = vunpack.c.h.b16 %v336
    %v420 = vunpack.c.l.b16 %v337
    %v421 = vunpack.c.h.b16 %v337
    %v422 = vunpack.c.l.b16 %v338
    %v423 = vunpack.c.h.b16 %v338
    %v424 = vunpack.c.l.b16 %v339
    %v425 = vunpack.c.h.b16 %v339
    %v426 = vunpack.c.l.b16 %v340
    %v427 = vunpack.c.h.b16 %v340
    %v428 = vunpack.c.l.b16 %v341
    %v429 = vunpack.c.h.b16 %v341
    %v430 = vunpack.c.l.b16 %v342
    %v431 = vunpack.c.h.b16 %v342
    %v432 = vunpack.c.l.b16 %v343
    %v433 = vunpack.c.h.b16 %v343
    %v434 = vunpack.c.l.b16 %v344
    %v435 = vunpack.c.h.b16 %v344
    %v436 = vunpack.c.l.b16 %v345
    %v437 = vunpack.c.h.b16 %v345
    %v438 = vunpack.c.l.b16 %v346
    %v439 = vunpack.c.h.b16 %v346
    %v440 = vunpack.c.l.b16 %v347
    %v441 = vunpack.c.h.b16 %v347
    %v442 = vunpack.c.l.b16 %v348
    %v443 = vunpack.c.h.b16 %v348
    %v444 = vunpack.c.l.b16 %v349
    %v445 = vunpack.c.h.b16 %v349
    %v446 = vunpack.c.l.b16 %v350
    %v447 = vunpack.c.h.b16 %v350
    %v448 = vunpack.c.l.b16 %v351
    %v449 = vunpack.c.h.b16 %v351
    %v450 = vunpack.c.l.b16 %v352
    %v451 = vunpack.c.h.b16 %v352
    %v452 = vunpack.c.l.b16 %v353
    %v453 = vunpack.c.h.b16 %v353
    %v454 = vunpack.c.l.b16 %v354
    %v455 = vunpack.c.h.b16 %v354
    %v456 = vunpack.c.l.b16 %v355
    %v457 = vunpack.c.h.b16 %v355
    %v458 = vunpack.c.l.b16 %v356
    %v459 = vunpack.c.h.b16 %v356
    %v460 = vunpack.c.l.b16 %v357
    %v461 = vunpack.c.h.b16 %v357
    %v462 = vunpack.c.l.b16 %v358
    %v463 = vunpack.c.h.b16 %v358
    %v464 = vunpack.c.l.b16 %v359
    %v465 = vunpack.c.h.b16 %v359
    %v466 = vunpack.c.l.b16 %v360
    %v467 = vunpack.c.h.b16 %v360
    %v468 = vunpack.c.l.b16 %v361
    %v469 = vunpack.c.h.b16 %v361
    %v470 = vpack.c.b16 %v408, %v406
    %v471 = vpack.c.b16 %v409, %v407
    %v472 = vpack.c.b16 %v412, %v410
    %v473 = vpack.c.b16 %v413, %v411
    %v474 = vpack.c.b16 %v416, %v414
    %v475 = vpack.c.b16 %v417, %v415
    %v476 = vpack.c.b16 %v420, %v418
    %v477 = vpack.c.b16 %v421, %v419
    %v478 = vpack.c.b16 %v424, %v422
    %v479 = vpack.c.b16 %v425, %v423
    %v480 = vpack.c.b16 %v428, %v426
    %v481 = vpack.c.b16 %v429, %v427
    %v482 = vpack.c.b16 %v432, %v430
    %v483 = vpack.c.b16 %v433, %v431
    %v484 = vpack.c.b16 %v436, %v434
    %v485 = vpack.c.b16 %v437, %v435
    %v486 = vpack.c.b16 %v440, %v438
    %v487 = vpack.c.b16 %v441, %v439
    %v488 = vpack.c.b16 %v444, %v442
    %v489 = vpack.c.b16 %v445, %v443
    %v490 = vpack.c.b16 %v448, %v446
    %v491 = vpack.c.b16 %v449, %v447
    %v492 = vpack.c.b16 %v452, %v450
    %v493 = vpack.c.b16 %v453, %v451
    %v494 = vpack.c.b16 %v456, %v454
    %v495 = vpack.c.b16 %v457, %v455
    %v496 = vpack.c.b16 %v460, %v458
    %v497 = vpack.c.b16 %v461, %v459
    %v498 = vpack.c.b16 %v464, %v462
    %v499 = vpack.c.b16 %v465, %v463
    %v500 = vpack.c.b16 %v468, %v466
    %v501 = vpack.c.b16 %v469, %v467
    %534 = vmatprep.subr.bf16.mxu0 %v471
    %535 = vmatpush1.bf16.msra.mxu0 %v470
    %536 = vmatprep.subr.bf16.mxu0 %v473
    %537 = vmatpush1.bf16.msra.mxu0 %v472
    %538 = vmatprep.subr.bf16.mxu0 %v475
    %539 = vmatpush1.bf16.msra.mxu0 %v474
    %540 = vmatprep.subr.bf16.mxu0 %v477
    %541 = vmatpush1.bf16.msra.mxu0 %v476
    %542 = vmatprep.subr.bf16.mxu0 %v479
    %543 = vmatpush1.bf16.msra.mxu0 %v478
    %544 = vmatprep.subr.bf16.mxu0 %v481
    %545 = vmatpush1.bf16.msra.mxu0 %v480
    %546 = vmatprep.subr.bf16.mxu0 %v483
    %547 = vmatpush1.bf16.msra.mxu0 %v482
    %548 = vmatprep.subr.bf16.mxu0 %v485
    %549 = vmatpush1.bf16.msra.mxu0 %v484
    %550 = vmatprep.subr.bf16.mxu0 %v487
    %551 = vmatpush1.bf16.msra.mxu0 %v486
    %552 = vmatprep.subr.bf16.mxu0 %v489
    %553 = vmatpush1.bf16.msra.mxu0 %v488
    %554 = vmatprep.subr.bf16.mxu0 %v491
    %555 = vmatpush1.bf16.msra.mxu0 %v490
    %556 = vmatprep.subr.bf16.mxu0 %v493
    %557 = vmatpush1.bf16.msra.mxu0 %v492
    %558 = vmatprep.subr.bf16.mxu0 %v495
    %559 = vmatpush1.bf16.msra.mxu0 %v494
    %560 = vmatprep.subr.bf16.mxu0 %v497
    %561 = vmatpush1.bf16.msra.mxu0 %v496
    %562 = vmatprep.subr.bf16.mxu0 %v499
    %563 = vmatpush1.bf16.msra.mxu0 %v498
    %564 = vmatprep.subr.bf16.mxu0 %v501
    %565 = vmatpush1.bf16.msra.mxu0 %v500
    %566 = vmatprep.mubr.bf16.mxu0 %v315
    %567 = vmatmul.mubr.bf16.gmra.mrb[0].mxu0 %v314
    %v568 = vpop.f32.mrb[0].mxu0
    %v569 = vadd.f32 %v367, %v568
    %v570 = vpop.f32.mrb[0].mxu0
    %v571 = vadd.f32 %v371, %v570
    %v572 = vpop.f32.mrb[0].mxu0
    %v573 = vadd.f32 %v367, %v572
    %v574 = vpop.f32.mrb[0].mxu0
    %v575 = vadd.f32 %v371, %v574
    %576 = vmatprep.mubr.bf16.mxu0 %v317
    %577 = vmatmul.mubr.bf16.gmra.mrb[0].mxu0 %v316
    %v578 = vpop.f32.mrb[0].mxu0
    %v579 = vadd.f32 %v367, %v578
    %v580 = vpop.f32.mrb[0].mxu0
    %v581 = vadd.f32 %v371, %v580
    %v582 = vpop.f32.mrb[0].mxu0
    %v583 = vadd.f32 %v367, %v582
    %v584 = vpop.f32.mrb[0].mxu0
    %v585 = vadd.f32 %v371, %v584
    %586 = vmatprep.mubr.bf16.mxu0 %v319
    %587 = vmatmul.mubr.bf16.gmra.mrb[0].mxu0 %v318
    %v588 = vpop.f32.mrb[0].mxu0
    %v589 = vadd.f32 %v367, %v588
    %v590 = vpop.f32.mrb[0].mxu0
    %v591 = vadd.f32 %v371, %v590
    %v592 = vpop.f32.mrb[0].mxu0
    %v593 = vadd.f32 %v367, %v592
    %v594 = vpop.f32.mrb[0].mxu0
    %v595 = vadd.f32 %v371, %v594
    %596 = vmatprep.mubr.bf16.mxu0 %v321
    %597 = vmatmul.mubr.bf16.gmra.mrb[0].mxu0 %v320
    %v598 = vpop.f32.mrb[0].mxu0
    %v599 = vadd.f32 %v367, %v598
    %v600 = vpop.f32.mrb[0].mxu0
    %v601 = vadd.f32 %v371, %v600
    %v602 = vpop.f32.mrb[0].mxu0
    %v603 = vadd.f32 %v367, %v602
    %v604 = vpop.f32.mrb[0].mxu0
    %v605 = vadd.f32 %v371, %v604
    %606 = vmatprep.mubr.bf16.mxu0 %v323
    %607 = vmatmul.mubr.bf16.gmra.mrb[0].mxu0 %v322
    %v608 = vpop.f32.mrb[0].mxu0
    %v609 = vadd.f32 %v367, %v608
    %v610 = vpop.f32.mrb[0].mxu0
    %v611 = vadd.f32 %v371, %v610
    %v612 = vpop.f32.mrb[0].mxu0
    %v613 = vadd.f32 %v367, %v612
    %v614 = vpop.f32.mrb[0].mxu0
    %v615 = vadd.f32 %v371, %v614
    %616 = vmatprep.mubr.bf16.mxu0 %v325
    %617 = vmatmul.mubr.bf16.gmra.mrb[0].mxu0 %v324
    %v618 = vpop.f32.mrb[0].mxu0
    %v619 = vadd.f32 %v367, %v618
    %v620 = vpop.f32.mrb[0].mxu0
    %v621 = vadd.f32 %v371, %v620
    %v622 = vpop.f32.mrb[0].mxu0
    %v623 = vadd.f32 %v367, %v622
    %v624 = vpop.f32.mrb[0].mxu0
    %v625 = vadd.f32 %v371, %v624
    %626 = vmatprep.mubr.bf16.mxu0 %v327
    %627 = vmatmul.mubr.bf16.gmra.mrb[0].mxu0 %v326
    %v628 = vpop.f32.mrb[0].mxu0
    %v629 = vadd.f32 %v367, %v628
    %v630 = vpop.f32.mrb[0].mxu0
    %v631 = vadd.f32 %v371, %v630
    %v632 = vpop.f32.mrb[0].mxu0
    %v633 = vadd.f32 %v367, %v632
    %v634 = vpop.f32.mrb[0].mxu0
    %v635 = vadd.f32 %v371, %v634
    %636 = vmatprep.mubr.bf16.mxu0 %v329
    %637 = vmatmul.mubr.bf16.gmra.mrb[0].mxu0 %v328
    %v638 = vpop.f32.mrb[0].mxu0
    %v639 = vadd.f32 %v367, %v638
    %v640 = vpop.f32.mrb[0].mxu0
    %v641 = vadd.f32 %v371, %v640
    %v642 = vpop.f32.mrb[0].mxu0
    %v643 = vadd.f32 %v367, %v642
    %v644 = vpop.f32.mrb[0].mxu0
    %v645 = vadd.f32 %v371, %v644
    %646 = vdwg.mxu0
    %v647 = vmax.f32 %v569, 0.0
    %v648 = vmax.f32 %v571, 0.0
    %v649 = vmax.f32 %v573, 0.0
    %v650 = vmax.f32 %v575, 0.0
    %v651 = vmax.f32 %v579, 0.0
    %v652 = vmax.f32 %v581, 0.0
    %v653 = vmax.f32 %v583, 0.0
    %v654 = vmax.f32 %v585, 0.0
    %v655 = vmax.f32 %v589, 0.0
    %v656 = vmax.f32 %v591, 0.0
    %v657 = vmax.f32 %v593, 0.0
    %v658 = vmax.f32 %v595, 0.0
    %v659 = vmax.f32 %v599, 0.0
    %v660 = vmax.f32 %v601, 0.0
    %v661 = vmax.f32 %v603, 0.0
    %v662 = vmax.f32 %v605, 0.0
    %v663 = vmax.f32 %v609, 0.0
    %v664 = vmax.f32 %v611, 0.0
    %v665 = vmax.f32 %v613, 0.0
    %v666 = vmax.f32 %v615, 0.0
    %v667 = vmax.f32 %v619, 0.0
    %v668 = vmax.f32 %v621, 0.0
    %v669 = vmax.f32 %v623, 0.0
    %v670 = vmax.f32 %v625, 0.0
    %v671 = vmax.f32 %v629, 0.0
    %v672 = vmax.f32 %v631, 0.0
    %v673 = vmax.f32 %v633, 0.0
    %v674 = vmax.f32 %v635, 0.0
    %v675 = vmax.f32 %v639, 0.0
    %v676 = vmax.f32 %v641, 0.0
    %v677 = vmax.f32 %v643, 0.0
    %v678 = vmax.f32 %v645, 0.0
    %v679 = vpack.c.bf16 %v649, %v647
    %v680 = vpack.c.bf16 %v650, %v648
    %v681 = vpack.c.bf16 %v653, %v651
    %v682 = vpack.c.bf16 %v654, %v652
    %v683 = vpack.c.bf16 %v657, %v655
    %v684 = vpack.c.bf16 %v658, %v656
    %v685 = vpack.c.bf16 %v661, %v659
    %v686 = vpack.c.bf16 %v662, %v660
    %v687 = vpack.c.bf16 %v665, %v663
    %v688 = vpack.c.bf16 %v666, %v664
    %v689 = vpack.c.bf16 %v669, %v667
    %v690 = vpack.c.bf16 %v670, %v668
    %v691 = vpack.c.bf16 %v673, %v671
    %v692 = vpack.c.bf16 %v674, %v672
    %v693 = vpack.c.bf16 %v677, %v675
    %v694 = vpack.c.bf16 %v678, %v676
    %s695 = scalar_lea.vmem [#allocation2], 256
    %v696 = vld [vmem:[%s695] sm:$0xff]
    %v697 = vld [vmem:[%s695 + $0x8] sm:$0xff]
    %v698 = vld [vmem:[%s695 + $0x10] sm:$0xff]
    %v699 = vld [vmem:[%s695 + $0x18] sm:$0xff]
    %v700 = vld [vmem:[%s695 + $0x20] sm:$0xff]
    %v701 = vld [vmem:[%s695 + $0x28] sm:$0xff]
    %v702 = vld [vmem:[%s695 + $0x30] sm:$0xff]
    %v703 = vld [vmem:[%s695 + $0x38] sm:$0xff]
    %v704 = vld [vmem:[%s695 + $0x40] sm:$0xff]
    %v705 = vld [vmem:[%s695 + $0x48] sm:$0xff]
    %v706 = vld [vmem:[%s695 + $0x50] sm:$0xff]
    %v707 = vld [vmem:[%s695 + $0x58] sm:$0xff]
    %v708 = vld [vmem:[%s695 + $0x60] sm:$0xff]
    %v709 = vld [vmem:[%s695 + $0x68] sm:$0xff]
    %v710 = vld [vmem:[%s695 + $0x70] sm:$0xff]
    %v711 = vld [vmem:[%s695 + $0x78] sm:$0xff]
    %v712 = vld [vmem:[%s695 + $0x80] sm:$0xff]
    %v713 = vld [vmem:[%s695 + $0x88] sm:$0xff]
    %v714 = vld [vmem:[%s695 + $0x90] sm:$0xff]
    %v715 = vld [vmem:[%s695 + $0x98] sm:$0xff]
    %v716 = vld [vmem:[%s695 + $0xa0] sm:$0xff]
    %v717 = vld [vmem:[%s695 + $0xa8] sm:$0xff]
    %v718 = vld [vmem:[%s695 + $0xb0] sm:$0xff]
    %v719 = vld [vmem:[%s695 + $0xb8] sm:$0xff]
    %v720 = vld [vmem:[%s695 + $0xc0] sm:$0xff]
    %v721 = vld [vmem:[%s695 + $0xc8] sm:$0xff]
    %v722 = vld [vmem:[%s695 + $0xd0] sm:$0xff]
    %v723 = vld [vmem:[%s695 + $0xd8] sm:$0xff]
    %v724 = vld [vmem:[%s695 + $0xe0] sm:$0xff]
    %v725 = vld [vmem:[%s695 + $0xe8] sm:$0xff]
    %v726 = vld [vmem:[%s695 + $0xf0] sm:$0xff]
    %v727 = vld [vmem:[%s695 + $0xf8] sm:$0xff]
    %s728 = scalar_lea.vmem %s4, 2
    %v729 = vld [vmem:[%s728] sm:$0x3]
    %v731 = vlaneseq
    %v732 = vshrl.u32 %v731, 7
    %v733 = vsub.s32 0, %v732
    %v734 = vrot.slane %v729, %v733
    %v735 = vlaneseq
    %v736 = vshrl.u32 %v735, 7
    %v737 = vsub.s32 1, %v736
    %v738 = vrot.slane %v729, %v737
    %v773 = vunpack.c.l.b16 %v696
    %v774 = vunpack.c.h.b16 %v696
    %v775 = vunpack.c.l.b16 %v697
    %v776 = vunpack.c.h.b16 %v697
    %v777 = vunpack.c.l.b16 %v698
    %v778 = vunpack.c.h.b16 %v698
    %v779 = vunpack.c.l.b16 %v699
    %v780 = vunpack.c.h.b16 %v699
    %v781 = vunpack.c.l.b16 %v700
    %v782 = vunpack.c.h.b16 %v700
    %v783 = vunpack.c.l.b16 %v701
    %v784 = vunpack.c.h.b16 %v701
    %v785 = vunpack.c.l.b16 %v702
    %v786 = vunpack.c.h.b16 %v702
    %v787 = vunpack.c.l.b16 %v703
    %v788 = vunpack.c.h.b16 %v703
    %v789 = vunpack.c.l.b16 %v704
    %v790 = vunpack.c.h.b16 %v704
    %v791 = vunpack.c.l.b16 %v705
    %v792 = vunpack.c.h.b16 %v705
    %v793 = vunpack.c.l.b16 %v706
    %v794 = vunpack.c.h.b16 %v706
    %v795 = vunpack.c.l.b16 %v707
    %v796 = vunpack.c.h.b16 %v707
    %v797 = vunpack.c.l.b16 %v708
    %v798 = vunpack.c.h.b16 %v708
    %v799 = vunpack.c.l.b16 %v709
    %v800 = vunpack.c.h.b16 %v709
    %v801 = vunpack.c.l.b16 %v710
    %v802 = vunpack.c.h.b16 %v710
    %v803 = vunpack.c.l.b16 %v711
    %v804 = vunpack.c.h.b16 %v711
    %v805 = vunpack.c.l.b16 %v712
    %v806 = vunpack.c.h.b16 %v712
    %v807 = vunpack.c.l.b16 %v713
    %v808 = vunpack.c.h.b16 %v713
    %v809 = vunpack.c.l.b16 %v714
    %v810 = vunpack.c.h.b16 %v714
    %v811 = vunpack.c.l.b16 %v715
    %v812 = vunpack.c.h.b16 %v715
    %v813 = vunpack.c.l.b16 %v716
    %v814 = vunpack.c.h.b16 %v716
    %v815 = vunpack.c.l.b16 %v717
    %v816 = vunpack.c.h.b16 %v717
    %v817 = vunpack.c.l.b16 %v718
    %v818 = vunpack.c.h.b16 %v718
    %v819 = vunpack.c.l.b16 %v719
    %v820 = vunpack.c.h.b16 %v719
    %v821 = vunpack.c.l.b16 %v720
    %v822 = vunpack.c.h.b16 %v720
    %v823 = vunpack.c.l.b16 %v721
    %v824 = vunpack.c.h.b16 %v721
    %v825 = vunpack.c.l.b16 %v722
    %v826 = vunpack.c.h.b16 %v722
    %v827 = vunpack.c.l.b16 %v723
    %v828 = vunpack.c.h.b16 %v723
    %v829 = vunpack.c.l.b16 %v724
    %v830 = vunpack.c.h.b16 %v724
    %v831 = vunpack.c.l.b16 %v725
    %v832 = vunpack.c.h.b16 %v725
    %v833 = vunpack.c.l.b16 %v726
    %v834 = vunpack.c.h.b16 %v726
    %v835 = vunpack.c.l.b16 %v727
    %v836 = vunpack.c.h.b16 %v727
    %v837 = vpack.c.b16 %v775, %v773
    %v838 = vpack.c.b16 %v776, %v774
    %v839 = vpack.c.b16 %v779, %v777
    %v840 = vpack.c.b16 %v780, %v778
    %v841 = vpack.c.b16 %v783, %v781
    %v842 = vpack.c.b16 %v784, %v782
    %v843 = vpack.c.b16 %v787, %v785
    %v844 = vpack.c.b16 %v788, %v786
    %v845 = vpack.c.b16 %v791, %v789
    %v846 = vpack.c.b16 %v792, %v790
    %v847 = vpack.c.b16 %v795, %v793
    %v848 = vpack.c.b16 %v796, %v794
    %v849 = vpack.c.b16 %v799, %v797
    %v850 = vpack.c.b16 %v800, %v798
    %v851 = vpack.c.b16 %v803, %v801
    %v852 = vpack.c.b16 %v804, %v802
    %v853 = vpack.c.b16 %v807, %v805
    %v854 = vpack.c.b16 %v808, %v806
    %v855 = vpack.c.b16 %v811, %v809
    %v856 = vpack.c.b16 %v812, %v810
    %v857 = vpack.c.b16 %v815, %v813
    %v858 = vpack.c.b16 %v816, %v814
    %v859 = vpack.c.b16 %v819, %v817
    %v860 = vpack.c.b16 %v820, %v818
    %v861 = vpack.c.b16 %v823, %v821
    %v862 = vpack.c.b16 %v824, %v822
    %v863 = vpack.c.b16 %v827, %v825
    %v864 = vpack.c.b16 %v828, %v826
    %v865 = vpack.c.b16 %v831, %v829
    %v866 = vpack.c.b16 %v832, %v830
    %v867 = vpack.c.b16 %v835, %v833
    %v868 = vpack.c.b16 %v836, %v834
    %901 = vmatprep.subr.bf16.mxu0 %v838
    %902 = vmatpush1.bf16.msra.mxu0 %v837
    %903 = vmatprep.subr.bf16.mxu0 %v840
    %904 = vmatpush1.bf16.msra.mxu0 %v839
    %905 = vmatprep.subr.bf16.mxu0 %v842
    %906 = vmatpush1.bf16.msra.mxu0 %v841
    %907 = vmatprep.subr.bf16.mxu0 %v844
    %908 = vmatpush1.bf16.msra.mxu0 %v843
    %909 = vmatprep.subr.bf16.mxu0 %v846
    %910 = vmatpush1.bf16.msra.mxu0 %v845
    %911 = vmatprep.subr.bf16.mxu0 %v848
    %912 = vmatpush1.bf16.msra.mxu0 %v847
    %913 = vmatprep.subr.bf16.mxu0 %v850
    %914 = vmatpush1.bf16.msra.mxu0 %v849
    %915 = vmatprep.subr.bf16.mxu0 %v852
    %916 = vmatpush1.bf16.msra.mxu0 %v851
    %917 = vmatprep.subr.bf16.mxu0 %v854
    %918 = vmatpush1.bf16.msra.mxu0 %v853
    %919 = vmatprep.subr.bf16.mxu0 %v856
    %920 = vmatpush1.bf16.msra.mxu0 %v855
    %921 = vmatprep.subr.bf16.mxu0 %v858
    %922 = vmatpush1.bf16.msra.mxu0 %v857
    %923 = vmatprep.subr.bf16.mxu0 %v860
    %924 = vmatpush1.bf16.msra.mxu0 %v859
    %925 = vmatprep.subr.bf16.mxu0 %v862
    %926 = vmatpush1.bf16.msra.mxu0 %v861
    %927 = vmatprep.subr.bf16.mxu0 %v864
    %928 = vmatpush1.bf16.msra.mxu0 %v863
    %929 = vmatprep.subr.bf16.mxu0 %v866
    %930 = vmatpush1.bf16.msra.mxu0 %v865
    %931 = vmatprep.subr.bf16.mxu0 %v868
    %932 = vmatpush1.bf16.msra.mxu0 %v867
    %933 = vmatprep.mubr.bf16.mxu0 %v680
    %934 = vmatmul.mubr.bf16.gmra.mrb[0].mxu0 %v679
    %v935 = vpop.f32.mrb[0].mxu0
    %v936 = vadd.f32 %v734, %v935
    %v937 = vpop.f32.mrb[0].mxu0
    %v938 = vadd.f32 %v738, %v937
    %v939 = vpop.f32.mrb[0].mxu0
    %v940 = vadd.f32 %v734, %v939
    %v941 = vpop.f32.mrb[0].mxu0
    %v942 = vadd.f32 %v738, %v941
    %943 = vmatprep.mubr.bf16.mxu0 %v682
    %944 = vmatmul.mubr.bf16.gmra.mrb[0].mxu0 %v681
    %v945 = vpop.f32.mrb[0].mxu0
    %v946 = vadd.f32 %v734, %v945
    %v947 = vpop.f32.mrb[0].mxu0
    %v948 = vadd.f32 %v738, %v947
    %v949 = vpop.f32.mrb[0].mxu0
    %v950 = vadd.f32 %v734, %v949
    %v951 = vpop.f32.mrb[0].mxu0
    %v952 = vadd.f32 %v738, %v951
    %953 = vmatprep.mubr.bf16.mxu0 %v684
    %954 = vmatmul.mubr.bf16.gmra.mrb[0].mxu0 %v683
    %v955 = vpop.f32.mrb[0].mxu0
    %v956 = vadd.f32 %v734, %v955
    %v957 = vpop.f32.mrb[0].mxu0
    %v958 = vadd.f32 %v738, %v957
    %v959 = vpop.f32.mrb[0].mxu0
    %v960 = vadd.f32 %v734, %v959
    %v961 = vpop.f32.mrb[0].mxu0
    %v962 = vadd.f32 %v738, %v961
    %963 = vmatprep.mubr.bf16.mxu0 %v686
    %964 = vmatmul.mubr.bf16.gmra.mrb[0].mxu0 %v685
    %v965 = vpop.f32.mrb[0].mxu0
    %v966 = vadd.f32 %v734, %v965
    %v967 = vpop.f32.mrb[0].mxu0
    %v968 = vadd.f32 %v738, %v967
    %v969 = vpop.f32.mrb[0].mxu0
    %v970 = vadd.f32 %v734, %v969
    %v971 = vpop.f32.mrb[0].mxu0
    %v972 = vadd.f32 %v738, %v971
    %973 = vmatprep.mubr.bf16.mxu0 %v688
    %974 = vmatmul.mubr.bf16.gmra.mrb[0].mxu0 %v687
    %v975 = vpop.f32.mrb[0].mxu0
    %v976 = vadd.f32 %v734, %v975
    %v977 = vpop.f32.mrb[0].mxu0
    %v978 = vadd.f32 %v738, %v977
    %v979 = vpop.f32.mrb[0].mxu0
    %v980 = vadd.f32 %v734, %v979
    %v981 = vpop.f32.mrb[0].mxu0
    %v982 = vadd.f32 %v738, %v981
    %983 = vmatprep.mubr.bf16.mxu0 %v690
    %984 = vmatmul.mubr.bf16.gmra.mrb[0].mxu0 %v689
    %v985 = vpop.f32.mrb[0].mxu0
    %v986 = vadd.f32 %v734, %v985
    %v987 = vpop.f32.mrb[0].mxu0
    %v988 = vadd.f32 %v738, %v987
    %v989 = vpop.f32.mrb[0].mxu0
    %v990 = vadd.f32 %v734, %v989
    %v991 = vpop.f32.mrb[0].mxu0
    %v992 = vadd.f32 %v738, %v991
    %993 = vmatprep.mubr.bf16.mxu0 %v692
    %994 = vmatmul.mubr.bf16.gmra.mrb[0].mxu0 %v691
    %v995 = vpop.f32.mrb[0].mxu0
    %v996 = vadd.f32 %v734, %v995
    %v997 = vpop.f32.mrb[0].mxu0
    %v998 = vadd.f32 %v738, %v997
    %v999 = vpop.f32.mrb[0].mxu0
    %v1000 = vadd.f32 %v734, %v999
    %v1001 = vpop.f32.mrb[0].mxu0
    %v1002 = vadd.f32 %v738, %v1001
    %1003 = vmatprep.mubr.bf16.mxu0 %v694
    %1004 = vmatmul.mubr.bf16.gmra.mrb[0].mxu0 %v693
    %v1005 = vpop.f32.mrb[0].mxu0
    %v1006 = vadd.f32 %v734, %v1005
    %v1007 = vpop.f32.mrb[0].mxu0
    %v1008 = vadd.f32 %v738, %v1007
    %v1009 = vpop.f32.mrb[0].mxu0
    %v1010 = vadd.f32 %v734, %v1009
    %v1011 = vpop.f32.mrb[0].mxu0
    %v1012 = vadd.f32 %v738, %v1011
    %1013 = vdwg.mxu0
    %v1014 = vmax.f32 %v936, 0.0
    %v1015 = vmax.f32 %v938, 0.0
    %v1016 = vmax.f32 %v940, 0.0
    %v1017 = vmax.f32 %v942, 0.0
    %v1018 = vmax.f32 %v946, 0.0
    %v1019 = vmax.f32 %v948, 0.0
    %v1020 = vmax.f32 %v950, 0.0
    %v1021 = vmax.f32 %v952, 0.0
    %v1022 = vmax.f32 %v956, 0.0
    %v1023 = vmax.f32 %v958, 0.0
    %v1024 = vmax.f32 %v960, 0.0
    %v1025 = vmax.f32 %v962, 0.0
    %v1026 = vmax.f32 %v966, 0.0
    %v1027 = vmax.f32 %v968, 0.0
    %v1028 = vmax.f32 %v970, 0.0
    %v1029 = vmax.f32 %v972, 0.0
    %v1030 = vmax.f32 %v976, 0.0
    %v1031 = vmax.f32 %v978, 0.0
    %v1032 = vmax.f32 %v980, 0.0
    %v1033 = vmax.f32 %v982, 0.0
    %v1034 = vmax.f32 %v986, 0.0
    %v1035 = vmax.f32 %v988, 0.0
    %v1036 = vmax.f32 %v990, 0.0
    %v1037 = vmax.f32 %v992, 0.0
    %v1038 = vmax.f32 %v996, 0.0
    %v1039 = vmax.f32 %v998, 0.0
    %v1040 = vmax.f32 %v1000, 0.0
    %v1041 = vmax.f32 %v1002, 0.0
    %v1042 = vmax.f32 %v1006, 0.0
    %v1043 = vmax.f32 %v1008, 0.0
    %v1044 = vmax.f32 %v1010, 0.0
    %v1045 = vmax.f32 %v1012, 0.0
    %v1046 = vpack.c.bf16 %v1016, %v1014
    %v1047 = vpack.c.bf16 %v1017, %v1015
    %v1048 = vpack.c.bf16 %v1020, %v1018
    %v1049 = vpack.c.bf16 %v1021, %v1019
    %v1050 = vpack.c.bf16 %v1024, %v1022
    %v1051 = vpack.c.bf16 %v1025, %v1023
    %v1052 = vpack.c.bf16 %v1028, %v1026
    %v1053 = vpack.c.bf16 %v1029, %v1027
    %v1054 = vpack.c.bf16 %v1032, %v1030
    %v1055 = vpack.c.bf16 %v1033, %v1031
    %v1056 = vpack.c.bf16 %v1036, %v1034
    %v1057 = vpack.c.bf16 %v1037, %v1035
    %v1058 = vpack.c.bf16 %v1040, %v1038
    %v1059 = vpack.c.bf16 %v1041, %v1039
    %v1060 = vpack.c.bf16 %v1044, %v1042
    %v1061 = vpack.c.bf16 %v1045, %v1043
    %s1062 = scalar_lea.vmem [#allocation2], 512
    %v1063 = vld [vmem:[%s1062] sm:$0xff]
    %v1064 = vld [vmem:[%s1062 + $0x8] sm:$0xff]
    %v1065 = vld [vmem:[%s1062 + $0x10] sm:$0xff]
    %v1066 = vld [vmem:[%s1062 + $0x18] sm:$0xff]
    %v1067 = vld [vmem:[%s1062 + $0x20] sm:$0xff]
    %v1068 = vld [vmem:[%s1062 + $0x28] sm:$0xff]
    %v1069 = vld [vmem:[%s1062 + $0x30] sm:$0xff]
    %v1070 = vld [vmem:[%s1062 + $0x38] sm:$0xff]
    %v1071 = vld [vmem:[%s1062 + $0x40] sm:$0xff]
    %v1072 = vld [vmem:[%s1062 + $0x48] sm:$0xff]
    %v1073 = vld [vmem:[%s1062 + $0x50] sm:$0xff]
    %v1074 = vld [vmem:[%s1062 + $0x58] sm:$0xff]
    %v1075 = vld [vmem:[%s1062 + $0x60] sm:$0xff]
    %v1076 = vld [vmem:[%s1062 + $0x68] sm:$0xff]
    %v1077 = vld [vmem:[%s1062 + $0x70] sm:$0xff]
    %v1078 = vld [vmem:[%s1062 + $0x78] sm:$0xff]
    %v1079 = vld [vmem:[%s1062 + $0x80] sm:$0xff]
    %v1080 = vld [vmem:[%s1062 + $0x88] sm:$0xff]
    %v1081 = vld [vmem:[%s1062 + $0x90] sm:$0xff]
    %v1082 = vld [vmem:[%s1062 + $0x98] sm:$0xff]
    %v1083 = vld [vmem:[%s1062 + $0xa0] sm:$0xff]
    %v1084 = vld [vmem:[%s1062 + $0xa8] sm:$0xff]
    %v1085 = vld [vmem:[%s1062 + $0xb0] sm:$0xff]
    %v1086 = vld [vmem:[%s1062 + $0xb8] sm:$0xff]
    %v1087 = vld [vmem:[%s1062 + $0xc0] sm:$0xff]
    %v1088 = vld [vmem:[%s1062 + $0xc8] sm:$0xff]
    %v1089 = vld [vmem:[%s1062 + $0xd0] sm:$0xff]
    %v1090 = vld [vmem:[%s1062 + $0xd8] sm:$0xff]
    %v1091 = vld [vmem:[%s1062 + $0xe0] sm:$0xff]
    %v1092 = vld [vmem:[%s1062 + $0xe8] sm:$0xff]
    %v1093 = vld [vmem:[%s1062 + $0xf0] sm:$0xff]
    %v1094 = vld [vmem:[%s1062 + $0xf8] sm:$0xff]
    %s1095 = scalar_lea.vmem %s4, 4
    %v1096 = vld [vmem:[%s1095] sm:$0x3]
    %v1098 = vlaneseq
    %v1099 = vshrl.u32 %v1098, 7
    %v1100 = vsub.s32 0, %v1099
    %v1101 = vrot.slane %v1096, %v1100
    %v1102 = vlaneseq
    %v1103 = vshrl.u32 %v1102, 7
    %v1104 = vsub.s32 1, %v1103
    %v1105 = vrot.slane %v1096, %v1104
    %v1140 = vunpack.c.l.b16 %v1063
    %v1141 = vunpack.c.h.b16 %v1063
    %v1142 = vunpack.c.l.b16 %v1064
    %v1143 = vunpack.c.h.b16 %v1064
    %v1144 = vunpack.c.l.b16 %v1065
    %v1145 = vunpack.c.h.b16 %v1065
    %v1146 = vunpack.c.l.b16 %v1066
    %v1147 = vunpack.c.h.b16 %v1066
    %v1148 = vunpack.c.l.b16 %v1067
    %v1149 = vunpack.c.h.b16 %v1067
    %v1150 = vunpack.c.l.b16 %v1068
    %v1151 = vunpack.c.h.b16 %v1068
    %v1152 = vunpack.c.l.b16 %v1069
    %v1153 = vunpack.c.h.b16 %v1069
    %v1154 = vunpack.c.l.b16 %v1070
    %v1155 = vunpack.c.h.b16 %v1070
    %v1156 = vunpack.c.l.b16 %v1071
    %v1157 = vunpack.c.h.b16 %v1071
    %v1158 = vunpack.c.l.b16 %v1072
    %v1159 = vunpack.c.h.b16 %v1072
    %v1160 = vunpack.c.l.b16 %v1073
    %v1161 = vunpack.c.h.b16 %v1073
    %v1162 = vunpack.c.l.b16 %v1074
    %v1163 = vunpack.c.h.b16 %v1074
    %v1164 = vunpack.c.l.b16 %v1075
    %v1165 = vunpack.c.h.b16 %v1075
    %v1166 = vunpack.c.l.b16 %v1076
    %v1167 = vunpack.c.h.b16 %v1076
    %v1168 = vunpack.c.l.b16 %v1077
    %v1169 = vunpack.c.h.b16 %v1077
    %v1170 = vunpack.c.l.b16 %v1078
    %v1171 = vunpack.c.h.b16 %v1078
    %v1172 = vunpack.c.l.b16 %v1079
    %v1173 = vunpack.c.h.b16 %v1079
    %v1174 = vunpack.c.l.b16 %v1080
    %v1175 = vunpack.c.h.b16 %v1080
    %v1176 = vunpack.c.l.b16 %v1081
    %v1177 = vunpack.c.h.b16 %v1081
    %v1178 = vunpack.c.l.b16 %v1082
    %v1179 = vunpack.c.h.b16 %v1082
    %v1180 = vunpack.c.l.b16 %v1083
    %v1181 = vunpack.c.h.b16 %v1083
    %v1182 = vunpack.c.l.b16 %v1084
    %v1183 = vunpack.c.h.b16 %v1084
    %v1184 = vunpack.c.l.b16 %v1085
    %v1185 = vunpack.c.h.b16 %v1085
    %v1186 = vunpack.c.l.b16 %v1086
    %v1187 = vunpack.c.h.b16 %v1086
    %v1188 = vunpack.c.l.b16 %v1087
    %v1189 = vunpack.c.h.b16 %v1087
    %v1190 = vunpack.c.l.b16 %v1088
    %v1191 = vunpack.c.h.b16 %v1088
    %v1192 = vunpack.c.l.b16 %v1089
    %v1193 = vunpack.c.h.b16 %v1089
    %v1194 = vunpack.c.l.b16 %v1090
    %v1195 = vunpack.c.h.b16 %v1090
    %v1196 = vunpack.c.l.b16 %v1091
    %v1197 = vunpack.c.h.b16 %v1091
    %v1198 = vunpack.c.l.b16 %v1092
    %v1199 = vunpack.c.h.b16 %v1092
    %v1200 = vunpack.c.l.b16 %v1093
    %v1201 = vunpack.c.h.b16 %v1093
    %v1202 = vunpack.c.l.b16 %v1094
    %v1203 = vunpack.c.h.b16 %v1094
    %v1204 = vpack.c.b16 %v1142, %v1140
    %v1205 = vpack.c.b16 %v1143, %v1141
    %v1206 = vpack.c.b16 %v1146, %v1144
    %v1207 = vpack.c.b16 %v1147, %v1145
    %v1208 = vpack.c.b16 %v1150, %v1148
    %v1209 = vpack.c.b16 %v1151, %v1149
    %v1210 = vpack.c.b16 %v1154, %v1152
    %v1211 = vpack.c.b16 %v1155, %v1153
    %v1212 = vpack.c.b16 %v1158, %v1156
    %v1213 = vpack.c.b16 %v1159, %v1157
    %v1214 = vpack.c.b16 %v1162, %v1160
    %v1215 = vpack.c.b16 %v1163, %v1161
    %v1216 = vpack.c.b16 %v1166, %v1164
    %v1217 = vpack.c.b16 %v1167, %v1165
    %v1218 = vpack.c.b16 %v1170, %v1168
    %v1219 = vpack.c.b16 %v1171, %v1169
    %v1220 = vpack.c.b16 %v1174, %v1172
    %v1221 = vpack.c.b16 %v1175, %v1173
    %v1222 = vpack.c.b16 %v1178, %v1176
    %v1223 = vpack.c.b16 %v1179, %v1177
    %v1224 = vpack.c.b16 %v1182, %v1180
    %v1225 = vpack.c.b16 %v1183, %v1181
    %v1226 = vpack.c.b16 %v1186, %v1184
    %v1227 = vpack.c.b16 %v1187, %v1185
    %v1228 = vpack.c.b16 %v1190, %v1188
    %v1229 = vpack.c.b16 %v1191, %v1189
    %v1230 = vpack.c.b16 %v1194, %v1192
    %v1231 = vpack.c.b16 %v1195, %v1193
    %v1232 = vpack.c.b16 %v1198, %v1196
    %v1233 = vpack.c.b16 %v1199, %v1197
    %v1234 = vpack.c.b16 %v1202, %v1200
    %v1235 = vpack.c.b16 %v1203, %v1201
    %1268 = vmatprep.subr.bf16.mxu0 %v1205
    %1269 = vmatpush1.bf16.msra.mxu0 %v1204
    %1270 = vmatprep.subr.bf16.mxu0 %v1207
    %1271 = vmatpush1.bf16.msra.mxu0 %v1206
    %1272 = vmatprep.subr.bf16.mxu0 %v1209
    %1273 = vmatpush1.bf16.msra.mxu0 %v1208
    %1274 = vmatprep.subr.bf16.mxu0 %v1211
    %1275 = vmatpush1.bf16.msra.mxu0 %v1210
    %1276 = vmatprep.subr.bf16.mxu0 %v1213
    %1277 = vmatpush1.bf16.msra.mxu0 %v1212
    %1278 = vmatprep.subr.bf16.mxu0 %v1215
    %1279 = vmatpush1.bf16.msra.mxu0 %v1214
    %1280 = vmatprep.subr.bf16.mxu0 %v1217
    %1281 = vmatpush1.bf16.msra.mxu0 %v1216
    %1282 = vmatprep.subr.bf16.mxu0 %v1219
    %1283 = vmatpush1.bf16.msra.mxu0 %v1218
    %1284 = vmatprep.subr.bf16.mxu0 %v1221
    %1285 = vmatpush1.bf16.msra.mxu0 %v1220
    %1286 = vmatprep.subr.bf16.mxu0 %v1223
    %1287 = vmatpush1.bf16.msra.mxu0 %v1222
    %1288 = vmatprep.subr.bf16.mxu0 %v1225
    %1289 = vmatpush1.bf16.msra.mxu0 %v1224
    %1290 = vmatprep.subr.bf16.mxu0 %v1227
    %1291 = vmatpush1.bf16.msra.mxu0 %v1226
    %1292 = vmatprep.subr.bf16.mxu0 %v1229
    %1293 = vmatpush1.bf16.msra.mxu0 %v1228
    %1294 = vmatprep.subr.bf16.mxu0 %v1231
    %1295 = vmatpush1.bf16.msra.mxu0 %v1230
    %1296 = vmatprep.subr.bf16.mxu0 %v1233
    %1297 = vmatpush1.bf16.msra.mxu0 %v1232
    %1298 = vmatprep.subr.bf16.mxu0 %v1235
    %1299 = vmatpush1.bf16.msra.mxu0 %v1234
    %1300 = vmatprep.mubr.bf16.mxu0 %v1047
    %1301 = vmatmul.mubr.bf16.gmra.mrb[0].mxu0 %v1046
    %v1302 = vpop.f32.mrb[0].mxu0
    %v1303 = vadd.f32 %v1101, %v1302
    %v1304 = vpop.f32.mrb[0].mxu0
    %v1305 = vadd.f32 %v1105, %v1304
    %v1306 = vpop.f32.mrb[0].mxu0
    %v1307 = vadd.f32 %v1101, %v1306
    %v1308 = vpop.f32.mrb[0].mxu0
    %v1309 = vadd.f32 %v1105, %v1308
    %1310 = vmatprep.mubr.bf16.mxu0 %v1049
    %1311 = vmatmul.mubr.bf16.gmra.mrb[0].mxu0 %v1048
    %v1312 = vpop.f32.mrb[0].mxu0
    %v1313 = vadd.f32 %v1101, %v1312
    %v1314 = vpop.f32.mrb[0].mxu0
    %v1315 = vadd.f32 %v1105, %v1314
    %v1316 = vpop.f32.mrb[0].mxu0
    %v1317 = vadd.f32 %v1101, %v1316
    %v1318 = vpop.f32.mrb[0].mxu0
    %v1319 = vadd.f32 %v1105, %v1318
    %1320 = vmatprep.mubr.bf16.mxu0 %v1051
    %1321 = vmatmul.mubr.bf16.gmra.mrb[0].mxu0 %v1050
    %v1322 = vpop.f32.mrb[0].mxu0
    %v1323 = vadd.f32 %v1101, %v1322
    %v1324 = vpop.f32.mrb[0].mxu0
    %v1325 = vadd.f32 %v1105, %v1324
    %v1326 = vpop.f32.mrb[0].mxu0
    %v1327 = vadd.f32 %v1101, %v1326
    %v1328 = vpop.f32.mrb[0].mxu0
    %v1329 = vadd.f32 %v1105, %v1328
    %1330 = vmatprep.mubr.bf16.mxu0 %v1053
    %1331 = vmatmul.mubr.bf16.gmra.mrb[0].mxu0 %v1052
    %v1332 = vpop.f32.mrb[0].mxu0
    %v1333 = vadd.f32 %v1101, %v1332
    %v1334 = vpop.f32.mrb[0].mxu0
    %v1335 = vadd.f32 %v1105, %v1334
    %v1336 = vpop.f32.mrb[0].mxu0
    %v1337 = vadd.f32 %v1101, %v1336
    %v1338 = vpop.f32.mrb[0].mxu0
    %v1339 = vadd.f32 %v1105, %v1338
    %1340 = vmatprep.mubr.bf16.mxu0 %v1055
    %1341 = vmatmul.mubr.bf16.gmra.mrb[0].mxu0 %v1054
    %v1342 = vpop.f32.mrb[0].mxu0
    %v1343 = vadd.f32 %v1101, %v1342
    %v1344 = vpop.f32.mrb[0].mxu0
    %v1345 = vadd.f32 %v1105, %v1344
    %v1346 = vpop.f32.mrb[0].mxu0
    %v1347 = vadd.f32 %v1101, %v1346
    %v1348 = vpop.f32.mrb[0].mxu0
    %v1349 = vadd.f32 %v1105, %v1348
    %1350 = vmatprep.mubr.bf16.mxu0 %v1057
    %1351 = vmatmul.mubr.bf16.gmra.mrb[0].mxu0 %v1056
    %v1352 = vpop.f32.mrb[0].mxu0
    %v1353 = vadd.f32 %v1101, %v1352
    %v1354 = vpop.f32.mrb[0].mxu0
    %v1355 = vadd.f32 %v1105, %v1354
    %v1356 = vpop.f32.mrb[0].mxu0
    %v1357 = vadd.f32 %v1101, %v1356
    %v1358 = vpop.f32.mrb[0].mxu0
    %v1359 = vadd.f32 %v1105, %v1358
    %1360 = vmatprep.mubr.bf16.mxu0 %v1059
    %1361 = vmatmul.mubr.bf16.gmra.mrb[0].mxu0 %v1058
    %v1362 = vpop.f32.mrb[0].mxu0
    %v1363 = vadd.f32 %v1101, %v1362
    %v1364 = vpop.f32.mrb[0].mxu0
    %v1365 = vadd.f32 %v1105, %v1364
    %v1366 = vpop.f32.mrb[0].mxu0
    %v1367 = vadd.f32 %v1101, %v1366
    %v1368 = vpop.f32.mrb[0].mxu0
    %v1369 = vadd.f32 %v1105, %v1368
    %1370 = vmatprep.mubr.bf16.mxu0 %v1061
    %1371 = vmatmul.mubr.bf16.gmra.mrb[0].mxu0 %v1060
    %v1372 = vpop.f32.mrb[0].mxu0
    %v1373 = vadd.f32 %v1101, %v1372
    %v1374 = vpop.f32.mrb[0].mxu0
    %v1375 = vadd.f32 %v1105, %v1374
    %v1376 = vpop.f32.mrb[0].mxu0
    %v1377 = vadd.f32 %v1101, %v1376
    %v1378 = vpop.f32.mrb[0].mxu0
    %v1379 = vadd.f32 %v1105, %v1378
    %1380 = vdwg.mxu0
    %v1381 = vmax.f32 %v1303, 0.0
    %v1382 = vmax.f32 %v1305, 0.0
    %v1383 = vmax.f32 %v1307, 0.0
    %v1384 = vmax.f32 %v1309, 0.0
    %v1385 = vmax.f32 %v1313, 0.0
    %v1386 = vmax.f32 %v1315, 0.0
    %v1387 = vmax.f32 %v1317, 0.0
    %v1388 = vmax.f32 %v1319, 0.0
    %v1389 = vmax.f32 %v1323, 0.0
    %v1390 = vmax.f32 %v1325, 0.0
    %v1391 = vmax.f32 %v1327, 0.0
    %v1392 = vmax.f32 %v1329, 0.0
    %v1393 = vmax.f32 %v1333, 0.0
    %v1394 = vmax.f32 %v1335, 0.0
    %v1395 = vmax.f32 %v1337, 0.0
    %v1396 = vmax.f32 %v1339, 0.0
    %v1397 = vmax.f32 %v1343, 0.0
    %v1398 = vmax.f32 %v1345, 0.0
    %v1399 = vmax.f32 %v1347, 0.0
    %v1400 = vmax.f32 %v1349, 0.0
    %v1401 = vmax.f32 %v1353, 0.0
    %v1402 = vmax.f32 %v1355, 0.0
    %v1403 = vmax.f32 %v1357, 0.0
    %v1404 = vmax.f32 %v1359, 0.0
    %v1405 = vmax.f32 %v1363, 0.0
    %v1406 = vmax.f32 %v1365, 0.0
    %v1407 = vmax.f32 %v1367, 0.0
    %v1408 = vmax.f32 %v1369, 0.0
    %v1409 = vmax.f32 %v1373, 0.0
    %v1410 = vmax.f32 %v1375, 0.0
    %v1411 = vmax.f32 %v1377, 0.0
    %v1412 = vmax.f32 %v1379, 0.0
    %v1413 = vpack.c.bf16 %v1383, %v1381
    %v1414 = vpack.c.bf16 %v1384, %v1382
    %v1415 = vpack.c.bf16 %v1387, %v1385
    %v1416 = vpack.c.bf16 %v1388, %v1386
    %v1417 = vpack.c.bf16 %v1391, %v1389
    %v1418 = vpack.c.bf16 %v1392, %v1390
    %v1419 = vpack.c.bf16 %v1395, %v1393
    %v1420 = vpack.c.bf16 %v1396, %v1394
    %v1421 = vpack.c.bf16 %v1399, %v1397
    %v1422 = vpack.c.bf16 %v1400, %v1398
    %v1423 = vpack.c.bf16 %v1403, %v1401
    %v1424 = vpack.c.bf16 %v1404, %v1402
    %v1425 = vpack.c.bf16 %v1407, %v1405
    %v1426 = vpack.c.bf16 %v1408, %v1406
    %v1427 = vpack.c.bf16 %v1411, %v1409
    %v1428 = vpack.c.bf16 %v1412, %v1410
    %s1429 = scalar_lea.vmem [#allocation2], 768
    %v1430 = vld [vmem:[%s1429] sm:$0xff]
    %v1431 = vld [vmem:[%s1429 + $0x8] sm:$0xff]
    %v1432 = vld [vmem:[%s1429 + $0x10] sm:$0xff]
    %v1433 = vld [vmem:[%s1429 + $0x18] sm:$0xff]
    %v1434 = vld [vmem:[%s1429 + $0x20] sm:$0xff]
    %v1435 = vld [vmem:[%s1429 + $0x28] sm:$0xff]
    %v1436 = vld [vmem:[%s1429 + $0x30] sm:$0xff]
    %v1437 = vld [vmem:[%s1429 + $0x38] sm:$0xff]
    %v1438 = vld [vmem:[%s1429 + $0x40] sm:$0xff]
    %v1439 = vld [vmem:[%s1429 + $0x48] sm:$0xff]
    %v1440 = vld [vmem:[%s1429 + $0x50] sm:$0xff]
    %v1441 = vld [vmem:[%s1429 + $0x58] sm:$0xff]
    %v1442 = vld [vmem:[%s1429 + $0x60] sm:$0xff]
    %v1443 = vld [vmem:[%s1429 + $0x68] sm:$0xff]
    %v1444 = vld [vmem:[%s1429 + $0x70] sm:$0xff]
    %v1445 = vld [vmem:[%s1429 + $0x78] sm:$0xff]
    %v1446 = vld [vmem:[%s1429 + $0x80] sm:$0xff]
    %v1447 = vld [vmem:[%s1429 + $0x88] sm:$0xff]
    %v1448 = vld [vmem:[%s1429 + $0x90] sm:$0xff]
    %v1449 = vld [vmem:[%s1429 + $0x98] sm:$0xff]
    %v1450 = vld [vmem:[%s1429 + $0xa0] sm:$0xff]
    %v1451 = vld [vmem:[%s1429 + $0xa8] sm:$0xff]
    %v1452 = vld [vmem:[%s1429 + $0xb0] sm:$0xff]
    %v1453 = vld [vmem:[%s1429 + $0xb8] sm:$0xff]
    %v1454 = vld [vmem:[%s1429 + $0xc0] sm:$0xff]
    %v1455 = vld [vmem:[%s1429 + $0xc8] sm:$0xff]
    %v1456 = vld [vmem:[%s1429 + $0xd0] sm:$0xff]
    %v1457 = vld [vmem:[%s1429 + $0xd8] sm:$0xff]
    %v1458 = vld [vmem:[%s1429 + $0xe0] sm:$0xff]
    %v1459 = vld [vmem:[%s1429 + $0xe8] sm:$0xff]
    %v1460 = vld [vmem:[%s1429 + $0xf0] sm:$0xff]
    %v1461 = vld [vmem:[%s1429 + $0xf8] sm:$0xff]
    %s1462 = scalar_lea.vmem %s4, 6
    %v1463 = vld [vmem:[%s1462] sm:$0x3]
    %v1465 = vlaneseq
    %v1466 = vshrl.u32 %v1465, 7
    %v1467 = vsub.s32 0, %v1466
    %v1468 = vrot.slane %v1463, %v1467
    %v1469 = vlaneseq
    %v1470 = vshrl.u32 %v1469, 7
    %v1471 = vsub.s32 1, %v1470
    %v1472 = vrot.slane %v1463, %v1471
    %v1507 = vunpack.c.l.b16 %v1430
    %v1508 = vunpack.c.h.b16 %v1430
    %v1509 = vunpack.c.l.b16 %v1431
    %v1510 = vunpack.c.h.b16 %v1431
    %v1511 = vunpack.c.l.b16 %v1432
    %v1512 = vunpack.c.h.b16 %v1432
    %v1513 = vunpack.c.l.b16 %v1433
    %v1514 = vunpack.c.h.b16 %v1433
    %v1515 = vunpack.c.l.b16 %v1434
    %v1516 = vunpack.c.h.b16 %v1434
    %v1517 = vunpack.c.l.b16 %v1435
    %v1518 = vunpack.c.h.b16 %v1435
    %v1519 = vunpack.c.l.b16 %v1436
    %v1520 = vunpack.c.h.b16 %v1436
    %v1521 = vunpack.c.l.b16 %v1437
    %v1522 = vunpack.c.h.b16 %v1437
    %v1523 = vunpack.c.l.b16 %v1438
    %v1524 = vunpack.c.h.b16 %v1438
    %v1525 = vunpack.c.l.b16 %v1439
    %v1526 = vunpack.c.h.b16 %v1439
    %v1527 = vunpack.c.l.b16 %v1440
    %v1528 = vunpack.c.h.b16 %v1440
    %v1529 = vunpack.c.l.b16 %v1441
    %v1530 = vunpack.c.h.b16 %v1441
    %v1531 = vunpack.c.l.b16 %v1442
    %v1532 = vunpack.c.h.b16 %v1442
    %v1533 = vunpack.c.l.b16 %v1443
    %v1534 = vunpack.c.h.b16 %v1443
    %v1535 = vunpack.c.l.b16 %v1444
    %v1536 = vunpack.c.h.b16 %v1444
    %v1537 = vunpack.c.l.b16 %v1445
    %v1538 = vunpack.c.h.b16 %v1445
    %v1539 = vunpack.c.l.b16 %v1446
    %v1540 = vunpack.c.h.b16 %v1446
    %v1541 = vunpack.c.l.b16 %v1447
    %v1542 = vunpack.c.h.b16 %v1447
    %v1543 = vunpack.c.l.b16 %v1448
    %v1544 = vunpack.c.h.b16 %v1448
    %v1545 = vunpack.c.l.b16 %v1449
    %v1546 = vunpack.c.h.b16 %v1449
    %v1547 = vunpack.c.l.b16 %v1450
    %v1548 = vunpack.c.h.b16 %v1450
    %v1549 = vunpack.c.l.b16 %v1451
    %v1550 = vunpack.c.h.b16 %v1451
    %v1551 = vunpack.c.l.b16 %v1452
    %v1552 = vunpack.c.h.b16 %v1452
    %v1553 = vunpack.c.l.b16 %v1453
    %v1554 = vunpack.c.h.b16 %v1453
    %v1555 = vunpack.c.l.b16 %v1454
    %v1556 = vunpack.c.h.b16 %v1454
    %v1557 = vunpack.c.l.b16 %v1455
    %v1558 = vunpack.c.h.b16 %v1455
    %v1559 = vunpack.c.l.b16 %v1456
    %v1560 = vunpack.c.h.b16 %v1456
    %v1561 = vunpack.c.l.b16 %v1457
    %v1562 = vunpack.c.h.b16 %v1457
    %v1563 = vunpack.c.l.b16 %v1458
    %v1564 = vunpack.c.h.b16 %v1458
    %v1565 = vunpack.c.l.b16 %v1459
    %v1566 = vunpack.c.h.b16 %v1459
    %v1567 = vunpack.c.l.b16 %v1460
    %v1568 = vunpack.c.h.b16 %v1460
    %v1569 = vunpack.c.l.b16 %v1461
    %v1570 = vunpack.c.h.b16 %v1461
    %v1571 = vpack.c.b16 %v1509, %v1507
    %v1572 = vpack.c.b16 %v1510, %v1508
    %v1573 = vpack.c.b16 %v1513, %v1511
    %v1574 = vpack.c.b16 %v1514, %v1512
    %v1575 = vpack.c.b16 %v1517, %v1515
    %v1576 = vpack.c.b16 %v1518, %v1516
    %v1577 = vpack.c.b16 %v1521, %v1519
    %v1578 = vpack.c.b16 %v1522, %v1520
    %v1579 = vpack.c.b16 %v1525, %v1523
    %v1580 = vpack.c.b16 %v1526, %v1524
    %v1581 = vpack.c.b16 %v1529, %v1527
    %v1582 = vpack.c.b16 %v1530, %v1528
    %v1583 = vpack.c.b16 %v1533, %v1531
    %v1584 = vpack.c.b16 %v1534, %v1532
    %v1585 = vpack.c.b16 %v1537, %v1535
    %v1586 = vpack.c.b16 %v1538, %v1536
    %v1587 = vpack.c.b16 %v1541, %v1539
    %v1588 = vpack.c.b16 %v1542, %v1540
    %v1589 = vpack.c.b16 %v1545, %v1543
    %v1590 = vpack.c.b16 %v1546, %v1544
    %v1591 = vpack.c.b16 %v1549, %v1547
    %v1592 = vpack.c.b16 %v1550, %v1548
    %v1593 = vpack.c.b16 %v1553, %v1551
    %v1594 = vpack.c.b16 %v1554, %v1552
    %v1595 = vpack.c.b16 %v1557, %v1555
    %v1596 = vpack.c.b16 %v1558, %v1556
    %v1597 = vpack.c.b16 %v1561, %v1559
    %v1598 = vpack.c.b16 %v1562, %v1560
    %v1599 = vpack.c.b16 %v1565, %v1563
    %v1600 = vpack.c.b16 %v1566, %v1564
    %v1601 = vpack.c.b16 %v1569, %v1567
    %v1602 = vpack.c.b16 %v1570, %v1568
    %1635 = vmatprep.subr.bf16.mxu0 %v1572
    %1636 = vmatpush1.bf16.msra.mxu0 %v1571
    %1637 = vmatprep.subr.bf16.mxu0 %v1574
    %1638 = vmatpush1.bf16.msra.mxu0 %v1573
    %1639 = vmatprep.subr.bf16.mxu0 %v1576
    %1640 = vmatpush1.bf16.msra.mxu0 %v1575
    %1641 = vmatprep.subr.bf16.mxu0 %v1578
    %1642 = vmatpush1.bf16.msra.mxu0 %v1577
    %1643 = vmatprep.subr.bf16.mxu0 %v1580
    %1644 = vmatpush1.bf16.msra.mxu0 %v1579
    %1645 = vmatprep.subr.bf16.mxu0 %v1582
    %1646 = vmatpush1.bf16.msra.mxu0 %v1581
    %1647 = vmatprep.subr.bf16.mxu0 %v1584
    %1648 = vmatpush1.bf16.msra.mxu0 %v1583
    %1649 = vmatprep.subr.bf16.mxu0 %v1586
    %1650 = vmatpush1.bf16.msra.mxu0 %v1585
    %1651 = vmatprep.subr.bf16.mxu0 %v1588
    %1652 = vmatpush1.bf16.msra.mxu0 %v1587
    %1653 = vmatprep.subr.bf16.mxu0 %v1590
    %1654 = vmatpush1.bf16.msra.mxu0 %v1589
    %1655 = vmatprep.subr.bf16.mxu0 %v1592
    %1656 = vmatpush1.bf16.msra.mxu0 %v1591
    %1657 = vmatprep.subr.bf16.mxu0 %v1594
    %1658 = vmatpush1.bf16.msra.mxu0 %v1593
    %1659 = vmatprep.subr.bf16.mxu0 %v1596
    %1660 = vmatpush1.bf16.msra.mxu0 %v1595
    %1661 = vmatprep.subr.bf16.mxu0 %v1598
    %1662 = vmatpush1.bf16.msra.mxu0 %v1597
    %1663 = vmatprep.subr.bf16.mxu0 %v1600
    %1664 = vmatpush1.bf16.msra.mxu0 %v1599
    %1665 = vmatprep.subr.bf16.mxu0 %v1602
    %1666 = vmatpush1.bf16.msra.mxu0 %v1601
    %1667 = vmatprep.mubr.bf16.mxu0 %v1414
    %1668 = vmatmul.mubr.bf16.gmra.mrb[0].mxu0 %v1413
    %v1669 = vpop.f32.mrb[0].mxu0
    %v1670 = vadd.f32 %v1468, %v1669
    %v1671 = vpop.f32.mrb[0].mxu0
    %v1672 = vadd.f32 %v1472, %v1671
    %v1673 = vpop.f32.mrb[0].mxu0
    %v1674 = vadd.f32 %v1468, %v1673
    %v1675 = vpop.f32.mrb[0].mxu0
    %v1676 = vadd.f32 %v1472, %v1675
    %1677 = vmatprep.mubr.bf16.mxu0 %v1416
    %1678 = vmatmul.mubr.bf16.gmra.mrb[0].mxu0 %v1415
    %v1679 = vpop.f32.mrb[0].mxu0
    %v1680 = vadd.f32 %v1468, %v1679
    %v1681 = vpop.f32.mrb[0].mxu0
    %v1682 = vadd.f32 %v1472, %v1681
    %v1683 = vpop.f32.mrb[0].mxu0
    %v1684 = vadd.f32 %v1468, %v1683
    %v1685 = vpop.f32.mrb[0].mxu0
    %v1686 = vadd.f32 %v1472, %v1685
    %1687 = vmatprep.mubr.bf16.mxu0 %v1418
    %1688 = vmatmul.mubr.bf16.gmra.mrb[0].mxu0 %v1417
    %v1689 = vpop.f32.mrb[0].mxu0
    %v1690 = vadd.f32 %v1468, %v1689
    %v1691 = vpop.f32.mrb[0].mxu0
    %v1692 = vadd.f32 %v1472, %v1691
    %v1693 = vpop.f32.mrb[0].mxu0
    %v1694 = vadd.f32 %v1468, %v1693
    %v1695 = vpop.f32.mrb[0].mxu0
    %v1696 = vadd.f32 %v1472, %v1695
    %1697 = vmatprep.mubr.bf16.mxu0 %v1420
    %1698 = vmatmul.mubr.bf16.gmra.mrb[0].mxu0 %v1419
    %v1699 = vpop.f32.mrb[0].mxu0
    %v1700 = vadd.f32 %v1468, %v1699
    %v1701 = vpop.f32.mrb[0].mxu0
    %v1702 = vadd.f32 %v1472, %v1701
    %v1703 = vpop.f32.mrb[0].mxu0
    %v1704 = vadd.f32 %v1468, %v1703
    %v1705 = vpop.f32.mrb[0].mxu0
    %v1706 = vadd.f32 %v1472, %v1705
    %1707 = vmatprep.mubr.bf16.mxu0 %v1422
    %1708 = vmatmul.mubr.bf16.gmra.mrb[0].mxu0 %v1421
    %v1709 = vpop.f32.mrb[0].mxu0
    %v1710 = vadd.f32 %v1468, %v1709
    %v1711 = vpop.f32.mrb[0].mxu0
    %v1712 = vadd.f32 %v1472, %v1711
    %v1713 = vpop.f32.mrb[0].mxu0
    %v1714 = vadd.f32 %v1468, %v1713
    %v1715 = vpop.f32.mrb[0].mxu0
    %v1716 = vadd.f32 %v1472, %v1715
    %1717 = vmatprep.mubr.bf16.mxu0 %v1424
    %1718 = vmatmul.mubr.bf16.gmra.mrb[0].mxu0 %v1423
    %v1719 = vpop.f32.mrb[0].mxu0
    %v1720 = vadd.f32 %v1468, %v1719
    %v1721 = vpop.f32.mrb[0].mxu0
    %v1722 = vadd.f32 %v1472, %v1721
    %v1723 = vpop.f32.mrb[0].mxu0
    %v1724 = vadd.f32 %v1468, %v1723
    %v1725 = vpop.f32.mrb[0].mxu0
    %v1726 = vadd.f32 %v1472, %v1725
    %1727 = vmatprep.mubr.bf16.mxu0 %v1426
    %1728 = vmatmul.mubr.bf16.gmra.mrb[0].mxu0 %v1425
    %v1729 = vpop.f32.mrb[0].mxu0
    %v1730 = vadd.f32 %v1468, %v1729
    %v1731 = vpop.f32.mrb[0].mxu0
    %v1732 = vadd.f32 %v1472, %v1731
    %v1733 = vpop.f32.mrb[0].mxu0
    %v1734 = vadd.f32 %v1468, %v1733
    %v1735 = vpop.f32.mrb[0].mxu0
    %v1736 = vadd.f32 %v1472, %v1735
    %1737 = vmatprep.mubr.bf16.mxu0 %v1428
    %1738 = vmatmul.mubr.bf16.gmra.mrb[0].mxu0 %v1427
    %v1739 = vpop.f32.mrb[0].mxu0
    %v1740 = vadd.f32 %v1468, %v1739
    %v1741 = vpop.f32.mrb[0].mxu0
    %v1742 = vadd.f32 %v1472, %v1741
    %v1743 = vpop.f32.mrb[0].mxu0
    %v1744 = vadd.f32 %v1468, %v1743
    %v1745 = vpop.f32.mrb[0].mxu0
    %v1746 = vadd.f32 %v1472, %v1745
    %1747 = vdwg.mxu0
    %v1748 = vmax.f32 %v1670, 0.0
    %v1749 = vmax.f32 %v1672, 0.0
    %v1750 = vmax.f32 %v1674, 0.0
    %v1751 = vmax.f32 %v1676, 0.0
    %v1752 = vmax.f32 %v1680, 0.0
    %v1753 = vmax.f32 %v1682, 0.0
    %v1754 = vmax.f32 %v1684, 0.0
    %v1755 = vmax.f32 %v1686, 0.0
    %v1756 = vmax.f32 %v1690, 0.0
    %v1757 = vmax.f32 %v1692, 0.0
    %v1758 = vmax.f32 %v1694, 0.0
    %v1759 = vmax.f32 %v1696, 0.0
    %v1760 = vmax.f32 %v1700, 0.0
    %v1761 = vmax.f32 %v1702, 0.0
    %v1762 = vmax.f32 %v1704, 0.0
    %v1763 = vmax.f32 %v1706, 0.0
    %v1764 = vmax.f32 %v1710, 0.0
    %v1765 = vmax.f32 %v1712, 0.0
    %v1766 = vmax.f32 %v1714, 0.0
    %v1767 = vmax.f32 %v1716, 0.0
    %v1768 = vmax.f32 %v1720, 0.0
    %v1769 = vmax.f32 %v1722, 0.0
    %v1770 = vmax.f32 %v1724, 0.0
    %v1771 = vmax.f32 %v1726, 0.0
    %v1772 = vmax.f32 %v1730, 0.0
    %v1773 = vmax.f32 %v1732, 0.0
    %v1774 = vmax.f32 %v1734, 0.0
    %v1775 = vmax.f32 %v1736, 0.0
    %v1776 = vmax.f32 %v1740, 0.0
    %v1777 = vmax.f32 %v1742, 0.0
    %v1778 = vmax.f32 %v1744, 0.0
    %v1779 = vmax.f32 %v1746, 0.0
    %v1780 = vpack.c.bf16 %v1750, %v1748
    %v1781 = vpack.c.bf16 %v1751, %v1749
    %v1782 = vpack.c.bf16 %v1754, %v1752
    %v1783 = vpack.c.bf16 %v1755, %v1753
    %v1784 = vpack.c.bf16 %v1758, %v1756
    %v1785 = vpack.c.bf16 %v1759, %v1757
    %v1786 = vpack.c.bf16 %v1762, %v1760
    %v1787 = vpack.c.bf16 %v1763, %v1761
    %v1788 = vpack.c.bf16 %v1766, %v1764
    %v1789 = vpack.c.bf16 %v1767, %v1765
    %v1790 = vpack.c.bf16 %v1770, %v1768
    %v1791 = vpack.c.bf16 %v1771, %v1769
    %v1792 = vpack.c.bf16 %v1774, %v1772
    %v1793 = vpack.c.bf16 %v1775, %v1773
    %v1794 = vpack.c.bf16 %v1778, %v1776
    %v1795 = vpack.c.bf16 %v1779, %v1777
    %v1796 = vld [vmem:[#allocation5] sm:$0xf]
    %v1797 = vld [vmem:[#allocation5 + $0x4] sm:$0xf]
    %v1798 = vld [vmem:[#allocation5 + $0x8] sm:$0xf]
    %v1799 = vld [vmem:[#allocation5 + $0xc] sm:$0xf]
    %v1800 = vld [vmem:[#allocation5 + $0x10] sm:$0xf]
    %v1801 = vld [vmem:[#allocation5 + $0x14] sm:$0xf]
    %v1802 = vld [vmem:[#allocation5 + $0x18] sm:$0xf]
    %v1803 = vld [vmem:[#allocation5 + $0x1c] sm:$0xf]
    %v1804 = vld [vmem:[#allocation5 + $0x20] sm:$0xf]
    %v1805 = vld [vmem:[#allocation5 + $0x24] sm:$0xf]
    %v1806 = vld [vmem:[#allocation5 + $0x28] sm:$0xf]
    %v1807 = vld [vmem:[#allocation5 + $0x2c] sm:$0xf]
    %v1808 = vld [vmem:[#allocation5 + $0x30] sm:$0xf]
    %v1809 = vld [vmem:[#allocation5 + $0x34] sm:$0xf]
    %v1810 = vld [vmem:[#allocation5 + $0x38] sm:$0xf]
    %v1811 = vld [vmem:[#allocation5 + $0x3c] sm:$0xf]
    %v1812 = vld [vmem:[#allocation5 + $0x40] sm:$0xf]
    %v1813 = vld [vmem:[#allocation5 + $0x44] sm:$0xf]
    %v1814 = vld [vmem:[#allocation5 + $0x48] sm:$0xf]
    %v1815 = vld [vmem:[#allocation5 + $0x4c] sm:$0xf]
    %v1816 = vld [vmem:[#allocation5 + $0x50] sm:$0xf]
    %v1817 = vld [vmem:[#allocation5 + $0x54] sm:$0xf]
    %v1818 = vld [vmem:[#allocation5 + $0x58] sm:$0xf]
    %v1819 = vld [vmem:[#allocation5 + $0x5c] sm:$0xf]
    %v1820 = vld [vmem:[#allocation5 + $0x60] sm:$0xf]
    %v1821 = vld [vmem:[#allocation5 + $0x64] sm:$0xf]
    %v1822 = vld [vmem:[#allocation5 + $0x68] sm:$0xf]
    %v1823 = vld [vmem:[#allocation5 + $0x6c] sm:$0xf]
    %v1824 = vld [vmem:[#allocation5 + $0x70] sm:$0xf]
    %v1825 = vld [vmem:[#allocation5 + $0x74] sm:$0xf]
    %v1826 = vld [vmem:[#allocation5 + $0x78] sm:$0xf]
    %v1827 = vld [vmem:[#allocation5 + $0x7c] sm:$0xf]
    %v1828 = vld [vmem:[%s6] sm:$0x1]
    %v1830 = vlaneseq
    %v1831 = vshrl.u32 %v1830, 7
    %v1832 = vsub.s32 0, %v1831
    %v1833 = vrot.slane %v1828, %v1832
    %v1867 = vunpack.c.l.b16 %v1796
    %v1868 = vunpack.c.l.b16 %v1797
    %v1869 = vunpack.c.l.b16 %v1798
    %v1870 = vunpack.c.l.b16 %v1799
    %v1871 = vunpack.c.l.b16 %v1800
    %v1872 = vunpack.c.l.b16 %v1801
    %v1873 = vunpack.c.l.b16 %v1802
    %v1874 = vunpack.c.l.b16 %v1803
    %v1875 = vunpack.c.l.b16 %v1804
    %v1876 = vunpack.c.l.b16 %v1805
    %v1877 = vunpack.c.l.b16 %v1806
    %v1878 = vunpack.c.l.b16 %v1807
    %v1879 = vunpack.c.l.b16 %v1808
    %v1880 = vunpack.c.l.b16 %v1809
    %v1881 = vunpack.c.l.b16 %v1810
    %v1882 = vunpack.c.l.b16 %v1811
    %v1883 = vunpack.c.l.b16 %v1812
    %v1884 = vunpack.c.l.b16 %v1813
    %v1885 = vunpack.c.l.b16 %v1814
    %v1886 = vunpack.c.l.b16 %v1815
    %v1887 = vunpack.c.l.b16 %v1816
    %v1888 = vunpack.c.l.b16 %v1817
    %v1889 = vunpack.c.l.b16 %v1818
    %v1890 = vunpack.c.l.b16 %v1819
    %v1891 = vunpack.c.l.b16 %v1820
    %v1892 = vunpack.c.l.b16 %v1821
    %v1893 = vunpack.c.l.b16 %v1822
    %v1894 = vunpack.c.l.b16 %v1823
    %v1895 = vunpack.c.l.b16 %v1824
    %v1896 = vunpack.c.l.b16 %v1825
    %v1897 = vunpack.c.l.b16 %v1826
    %v1898 = vunpack.c.l.b16 %v1827
    %v1899 = vpack.c.b16 %v1868, %v1867
    %v1900 = vpack.c.b16 %v1870, %v1869
    %v1901 = vpack.c.b16 %v1872, %v1871
    %v1902 = vpack.c.b16 %v1874, %v1873
    %v1903 = vpack.c.b16 %v1876, %v1875
    %v1904 = vpack.c.b16 %v1878, %v1877
    %v1905 = vpack.c.b16 %v1880, %v1879
    %v1906 = vpack.c.b16 %v1882, %v1881
    %v1907 = vpack.c.b16 %v1884, %v1883
    %v1908 = vpack.c.b16 %v1886, %v1885
    %v1909 = vpack.c.b16 %v1888, %v1887
    %v1910 = vpack.c.b16 %v1890, %v1889
    %v1911 = vpack.c.b16 %v1892, %v1891
    %v1912 = vpack.c.b16 %v1894, %v1893
    %v1913 = vpack.c.b16 %v1896, %v1895
    %v1914 = vpack.c.b16 %v1898, %v1897
    %1931 = vmatprep.subr.bf16.mxu0 0
    %1932 = vmatpush1.bf16.msra.mxu0 %v1899
    %1933 = vmatprep.subr.bf16.mxu0 0
    %1934 = vmatpush1.bf16.msra.mxu0 %v1900
    %1935 = vmatprep.subr.bf16.mxu0 0
    %1936 = vmatpush1.bf16.msra.mxu0 %v1901
    %1937 = vmatprep.subr.bf16.mxu0 0
    %1938 = vmatpush1.bf16.msra.mxu0 %v1902
    %1939 = vmatprep.subr.bf16.mxu0 0
    %1940 = vmatpush1.bf16.msra.mxu0 %v1903
    %1941 = vmatprep.subr.bf16.mxu0 0
    %1942 = vmatpush1.bf16.msra.mxu0 %v1904
    %1943 = vmatprep.subr.bf16.mxu0 0
    %1944 = vmatpush1.bf16.msra.mxu0 %v1905
    %1945 = vmatprep.subr.bf16.mxu0 0
    %1946 = vmatpush1.bf16.msra.mxu0 %v1906
    %1947 = vmatprep.subr.bf16.mxu0 0
    %1948 = vmatpush1.bf16.msra.mxu0 %v1907
    %1949 = vmatprep.subr.bf16.mxu0 0
    %1950 = vmatpush1.bf16.msra.mxu0 %v1908
    %1951 = vmatprep.subr.bf16.mxu0 0
    %1952 = vmatpush1.bf16.msra.mxu0 %v1909
    %1953 = vmatprep.subr.bf16.mxu0 0
    %1954 = vmatpush1.bf16.msra.mxu0 %v1910
    %1955 = vmatprep.subr.bf16.mxu0 0
    %1956 = vmatpush1.bf16.msra.mxu0 %v1911
    %1957 = vmatprep.subr.bf16.mxu0 0
    %1958 = vmatpush1.bf16.msra.mxu0 %v1912
    %1959 = vmatprep.subr.bf16.mxu0 0
    %1960 = vmatpush1.bf16.msra.mxu0 %v1913
    %1961 = vmatprep.subr.bf16.mxu0 0
    %1962 = vmatpush1.bf16.msra.mxu0 %v1914
    %1963 = vmatprep.mubr.bf16.mxu0 %v1781
    %1964 = vmatmul.mubr.bf16.gmra.mrb[0].mxu0 %v1780
    %v1965 = vpop.f32.mrb[0].mxu0
    %v1966 = vadd.f32 %v1833, %v1965
    %v1967 = vpop.f32.mrb[0].mxu0
    %v1968 = vpop.f32.mrb[0].mxu0
    %v1969 = vadd.f32 %v1833, %v1968
    %v1970 = vpop.f32.mrb[0].mxu0
    %1971 = vmatprep.mubr.bf16.mxu0 %v1783
    %1972 = vmatmul.mubr.bf16.gmra.mrb[0].mxu0 %v1782
    %v1973 = vpop.f32.mrb[0].mxu0
    %v1974 = vadd.f32 %v1833, %v1973
    %v1975 = vpop.f32.mrb[0].mxu0
    %v1976 = vpop.f32.mrb[0].mxu0
    %v1977 = vadd.f32 %v1833, %v1976
    %v1978 = vpop.f32.mrb[0].mxu0
    %1979 = vmatprep.mubr.bf16.mxu0 %v1785
    %1980 = vmatmul.mubr.bf16.gmra.mrb[0].mxu0 %v1784
    %v1981 = vpop.f32.mrb[0].mxu0
    %v1982 = vadd.f32 %v1833, %v1981
    %v1983 = vpop.f32.mrb[0].mxu0
    %v1984 = vpop.f32.mrb[0].mxu0
    %v1985 = vadd.f32 %v1833, %v1984
    %v1986 = vpop.f32.mrb[0].mxu0
    %1987 = vmatprep.mubr.bf16.mxu0 %v1787
    %1988 = vmatmul.mubr.bf16.gmra.mrb[0].mxu0 %v1786
    %v1989 = vpop.f32.mrb[0].mxu0
    %v1990 = vadd.f32 %v1833, %v1989
    %v1991 = vpop.f32.mrb[0].mxu0
    %v1992 = vpop.f32.mrb[0].mxu0
    %v1993 = vadd.f32 %v1833, %v1992
    %v1994 = vpop.f32.mrb[0].mxu0
    %1995 = vmatprep.mubr.bf16.mxu0 %v1789
    %1996 = vmatmul.mubr.bf16.gmra.mrb[0].mxu0 %v1788
    %v1997 = vpop.f32.mrb[0].mxu0
    %v1998 = vadd.f32 %v1833, %v1997
    %v1999 = vpop.f32.mrb[0].mxu0
    %v2000 = vpop.f32.mrb[0].mxu0
    %v2001 = vadd.f32 %v1833, %v2000
    %v2002 = vpop.f32.mrb[0].mxu0
    %2003 = vmatprep.mubr.bf16.mxu0 %v1791
    %2004 = vmatmul.mubr.bf16.gmra.mrb[0].mxu0 %v1790
    %v2005 = vpop.f32.mrb[0].mxu0
    %v2006 = vadd.f32 %v1833, %v2005
    %v2007 = vpop.f32.mrb[0].mxu0
    %v2008 = vpop.f32.mrb[0].mxu0
    %v2009 = vadd.f32 %v1833, %v2008
    %v2010 = vpop.f32.mrb[0].mxu0
    %2011 = vmatprep.mubr.bf16.mxu0 %v1793
    %2012 = vmatmul.mubr.bf16.gmra.mrb[0].mxu0 %v1792
    %v2013 = vpop.f32.mrb[0].mxu0
    %v2014 = vadd.f32 %v1833, %v2013
    %v2015 = vpop.f32.mrb[0].mxu0
    %v2016 = vpop.f32.mrb[0].mxu0
    %v2017 = vadd.f32 %v1833, %v2016
    %v2018 = vpop.f32.mrb[0].mxu0
    %2019 = vmatprep.mubr.bf16.mxu0 %v1795
    %2020 = vmatmul.mubr.bf16.gmra.mrb[0].mxu0 %v1794
    %v2021 = vpop.f32.mrb[0].mxu0
    %v2022 = vadd.f32 %v1833, %v2021
    %v2023 = vpop.f32.mrb[0].mxu0
    %v2024 = vpop.f32.mrb[0].mxu0
    %v2025 = vadd.f32 %v1833, %v2024
    %v2026 = vpop.f32.mrb[0].mxu0
    %2027 = vdwg.mxu0
    %v2028 = vpack.c.bf16 %v1969, %v1966
    %v2029 = vpack.c.bf16 %v1977, %v1974
    %v2030 = vpack.c.bf16 %v1985, %v1982
    %v2031 = vpack.c.bf16 %v1993, %v1990
    %v2032 = vpack.c.bf16 %v2001, %v1998
    %v2033 = vpack.c.bf16 %v2009, %v2006
    %v2034 = vpack.c.bf16 %v2017, %v2014
    %v2035 = vpack.c.bf16 %v2025, %v2022
    %v2044 = vunpack.c.l.b16 %v2028
    %v2045 = vunpack.c.h.b16 %v2028
    %v2046 = vunpack.c.l.b16 %v2029
    %v2047 = vunpack.c.h.b16 %v2029
    %v2048 = vunpack.c.l.b16 %v2030
    %v2049 = vunpack.c.h.b16 %v2030
    %v2050 = vunpack.c.l.b16 %v2031
    %v2051 = vunpack.c.h.b16 %v2031
    %v2052 = vunpack.c.l.b16 %v2032
    %v2053 = vunpack.c.h.b16 %v2032
    %v2054 = vunpack.c.l.b16 %v2033
    %v2055 = vunpack.c.h.b16 %v2033
    %v2056 = vunpack.c.l.b16 %v2034
    %v2057 = vunpack.c.h.b16 %v2034
    %v2058 = vunpack.c.l.b16 %v2035
    %v2059 = vunpack.c.h.b16 %v2035
    %v2060 = vpack.c.b16 %v2044, %v2044
    %v2061 = vpack.c.b16 %v2045, %v2045
    %v2062 = vpack.c.b16 %v2046, %v2046
    %v2063 = vpack.c.b16 %v2047, %v2047
    %v2064 = vpack.c.b16 %v2048, %v2048
    %v2065 = vpack.c.b16 %v2049, %v2049
    %v2066 = vpack.c.b16 %v2050, %v2050
    %v2067 = vpack.c.b16 %v2051, %v2051
    %v2068 = vpack.c.b16 %v2052, %v2052
    %v2069 = vpack.c.b16 %v2053, %v2053
    %v2070 = vpack.c.b16 %v2054, %v2054
    %v2071 = vpack.c.b16 %v2055, %v2055
    %v2072 = vpack.c.b16 %v2056, %v2056
    %v2073 = vpack.c.b16 %v2057, %v2057
    %v2074 = vpack.c.b16 %v2058, %v2058
    %v2075 = vpack.c.b16 %v2059, %v2059
    %2092 = vst [vmem:[#allocation7] sm:$0xf] %v2060
    %2093 = vst [vmem:[#allocation7 + $0x4] sm:$0xf] %v2061
    %2094 = vst [vmem:[#allocation7 + $0x8] sm:$0xf] %v2062
    %2095 = vst [vmem:[#allocation7 + $0xc] sm:$0xf] %v2063
    %2096 = vst [vmem:[#allocation7 + $0x10] sm:$0xf] %v2064
    %2097 = vst [vmem:[#allocation7 + $0x14] sm:$0xf] %v2065
    %2098 = vst [vmem:[#allocation7 + $0x18] sm:$0xf] %v2066
    %2099 = vst [vmem:[#allocation7 + $0x1c] sm:$0xf] %v2067
    %2100 = vst [vmem:[#allocation7 + $0x20] sm:$0xf] %v2068
    %2101 = vst [vmem:[#allocation7 + $0x24] sm:$0xf] %v2069
    %2102 = vst [vmem:[#allocation7 + $0x28] sm:$0xf] %v2070
    %2103 = vst [vmem:[#allocation7 + $0x2c] sm:$0xf] %v2071
    %2104 = vst [vmem:[#allocation7 + $0x30] sm:$0xf] %v2072
    %2105 = vst [vmem:[#allocation7 + $0x34] sm:$0xf] %v2073
    %2106 = vst [vmem:[#allocation7 + $0x38] sm:$0xf] %v2074
    %2107 = vst [vmem:[#allocation7 + $0x3c] sm:$0xf] %v2075
    // Predicated region
    $region38: #{tpu_custom_call.1} parent=1 // pred_check
      _
    $region39: #{tpu_custom_call.1} parent=1 // pred_check_branch
      %2109 = sbr.rel (0) target = $region41
    $region40: #{tpu_custom_call.1} parent=1 // pred_region
      %s2111 = ssub.s32 1024, 1024
      %2112 = vsyncadd [#allocation4], %s2111
      %s2113 = sshll.u32 [#allocation7], 4
      %s2114 = int_to_ptr.vmem [resolvable:$true] %s2113
      %2119 = dma.vmem_to_hbm [thread:$0]  %s2114, 1024, %s7, [#allocation4], 64, 64, 4
    $region41: #{tpu_custom_call.1} parent=1 // pred_fallthru
      _
    // Predicated region
    $region42: #{tpu_custom_call.1} parent=1 // pred_check
      _
    $region43: #{tpu_custom_call.1} parent=1 // pred_check_branch
      %2121 = sbr.rel (0) target = $region45
    $region44: #{tpu_custom_call.1} parent=1 // pred_region
      %2122 = dma.done [#allocation4], 1024
    $region45: #{tpu_custom_call.1} parent=1 // pred_fallthru
      _
    %2123 = vsyncpa [#allocation3], 1
    %2124 = vsyncpa [#allocation6], 1
    %2125 = vsyncpa [#allocation4], 1

</llo_original>
